<compile_context>
chip_gen: v7x
topology: tpu7x:2x2x1
jax: 0.10.0
libtpu: 0.0.40
codegen_flags: <defaults>
</compile_context>

<pallas_src>
import functools

import jax
import jax.numpy as jnp
from jax import lax
from jax.experimental import pallas as pl
from jax.experimental.pallas import tpu as pltpu


def _round_up(n, m):
    return ((n + m - 1) // m) * m


# ---------------------------------------------------------------------------
# Pallas kernel: LSTM recurrence over one time-chunk + fused output head.
# ---------------------------------------------------------------------------
def _lstm_kernel(x_ref, wih_ref, whh_ref, b_ref, wc_ref, bc_ref,
                 out_ref, h_scr, c_scr):
    """One grid step processes a chunk of Tc timesteps.

    x_ref   : (Tc*Bp, F) bf16   time-major, batch-padded, flattened chunk
    wih_ref : (F, 4*Hp)  bf16   input->gates (i,f,g,o), each gate padded to Hp
    whh_ref : (Hp, 4*Hp) bf16   hidden->gates
    b_ref   : (1, 4*Hp)  f32    combined bias (b_ih + b_hh), zero in padding
    wc_ref  : (Hp, Yp)   bf16   composed head  W_hid^T @ W_out^T  (padded)
    bc_ref  : (1, Yp)    f32    composed bias  b_hid @ W_out^T + b_out
    out_ref : (Bp, Yp)   f32
    h_scr, c_scr : (Bp, Hp) f32 recurrent state carried across grid steps
    """
    Bp = h_scr.shape[0]
    Hp = h_scr.shape[1]
    Tc = x_ref.shape[0] // Bp

    @pl.when(pl.program_id(0) == 0)
    def _():
        h_scr[...] = jnp.zeros_like(h_scr)
        c_scr[...] = jnp.zeros_like(c_scr)

    # Hoisted input projection: one large bf16 MXU matmul for the whole chunk.
    gates_x = (jnp.dot(x_ref[...], wih_ref[...],
                       preferred_element_type=jnp.float32)
               + b_ref[...])                                  # (Tc*Bp, 4*Hp) f32

    whh = whh_ref[...]                                        # load once per chunk
    h = h_scr[...]
    c = c_scr[...]

    # Fully unrolled recurrence (Tc is small & static); only a small
    # (Bp,Hp)x(Hp,4Hp) matmul + VPU/EUP gate math remains on the serial path.
    for tt in range(Tc):
        gx = gates_x[tt * Bp:(tt + 1) * Bp, :]                # sublane-aligned slice
        gates = gx + jnp.dot(h.astype(jnp.bfloat16), whh,
                             preferred_element_type=jnp.float32)
        # Each gate occupies its own lane-aligned Hp-wide block (PyTorch order).
        i_g = jax.nn.sigmoid(gates[:, 0 * Hp:1 * Hp])
        f_g = jax.nn.sigmoid(gates[:, 1 * Hp:2 * Hp])
        g_g = jnp.tanh(gates[:, 2 * Hp:3 * Hp])
        o_g = jax.nn.sigmoid(gates[:, 3 * Hp:4 * Hp])
        c = f_g * c + i_g * g_g
        h = o_g * jnp.tanh(c)

    h_scr[...] = h
    c_scr[...] = c

    @pl.when(pl.program_id(0) == pl.num_programs(0) - 1)
    def _():
        # state_comb == 'last': use final hidden state.
        # linear_hid -> dropout(eval: identity) -> linear_out composed into one
        # affine map; output lanes padded to Yp (lane-dense store).
        out_ref[...] = (jnp.dot(h.astype(jnp.bfloat16), wc_ref[...],
                                preferred_element_type=jnp.float32)
                        + bc_ref[...]).astype(out_ref.dtype)


# ---------------------------------------------------------------------------
# Wrapper
# ---------------------------------------------------------------------------
@functools.partial(jax.jit, static_argnames=("y_dim", "t_chunk"))
def lstm_net_forward(x_btf, kparams, *, y_dim, t_chunk=4):
    """x_btf: (B, T, F) float32 (PyTorch batch_first layout). Returns (B, y_dim)."""
    B, T, F = x_btf.shape
    Hp = kparams["whh"].shape[0]
    Yp = kparams["wc"].shape[1]

    if T % t_chunk != 0:
        t_chunk = T
    n_chunks = T // t_chunk
    Bp = max(8, _round_up(B, 8))                 # >= one sublane tile

    # Time-major + batch pad + flatten so each timestep is a sublane-aligned
    # (Bp, F) row block at offset t*Bp; cast to bf16 for the MXU.
    x = jnp.transpose(x_btf, (1, 0, 2))                       # (T, B, F)
    x = jnp.pad(x, ((0, 0), (0, Bp - B), (0, 0)))             # (T, Bp, F)
    x = x.reshape(T * Bp, F).astype(jnp.bfloat16)             # (T*Bp, F)

    full = lambda a: pl.BlockSpec(a.shape, lambda t: (0,) * a.ndim)

    out = pl.pallas_call(
        _lstm_kernel,
        out_shape=jax.ShapeDtypeStruct((Bp, Yp), jnp.float32),
        grid_spec=pltpu.PrefetchScalarGridSpec(
            num_scalar_prefetch=0,
            grid=(n_chunks,),
            in_specs=[
                pl.BlockSpec((t_chunk * Bp, F), lambda t: (t, 0)),  # x chunks
                full(kparams["wih"]),
                full(kparams["whh"]),
                full(kparams["b"]),
                full(kparams["wc"]),
                full(kparams["bc"]),
            ],
            out_specs=pl.BlockSpec((Bp, Yp), lambda t: (0, 0)),
            scratch_shapes=[
                pltpu.VMEM((Bp, Hp), jnp.float32),  # h state
                pltpu.VMEM((Bp, Hp), jnp.float32),  # c state
            ],
        ),
        compiler_params=pltpu.CompilerParams(
            dimension_semantics=("arbitrary",),     # serial time recurrence
            vmem_limit_bytes=32 * 1024 * 1024,
        ),
    )(x, kparams["wih"], kparams["whh"], kparams["b"],
      kparams["wc"], kparams["bc"])

    return out[:B, :y_dim]


# ---------------------------------------------------------------------------
# Parameters
# ---------------------------------------------------------------------------
def init_raw_params(key, feat_dim, hid_dim, y_dim):
    """Deterministic synthetic parameters in PyTorch layouts."""
    ks = jax.random.split(key, 8)
    s = 0.1
    return {
        "w_ih": jax.random.normal(ks[0], (4 * hid_dim, feat_dim), jnp.float32) * s,
        "w_hh": jax.random.normal(ks[1], (4 * hid_dim, hid_dim), jnp.float32) * s,
        "b_ih": jax.random.normal(ks[2], (4 * hid_dim,), jnp.float32) * s,
        "b_hh": jax.random.normal(ks[3], (4 * hid_dim,), jnp.float32) * s,
        "w_hid": jax.random.normal(ks[4], (hid_dim, hid_dim), jnp.float32) * s,
        "b_hid": jax.random.normal(ks[5], (hid_dim,), jnp.float32) * s,
        "w_out": jax.random.normal(ks[6], (y_dim, hid_dim), jnp.float32) * s,
        "b_out": jax.random.normal(ks[7], (y_dim,), jnp.float32) * s,
    }


def pack_params(raw, hid_dim, y_dim):
    """Transpose / pad / compose / cast raw params into kernel-ready buffers."""
    H = hid_dim
    Hp = _round_up(H, 128)           # each gate lane-aligned to a full vreg block
    Yp = _round_up(y_dim, 128)       # lane-dense output store

    def pad_gate_cols(w_t):          # (in_dim, 4H) -> (in_dim, 4*Hp)
        in_dim = w_t.shape[0]
        w4 = w_t.reshape(in_dim, 4, H)
        w4 = jnp.pad(w4, ((0, 0), (0, 0), (0, Hp - H)))
        return w4.reshape(in_dim, 4 * Hp)

    wih = pad_gate_cols(raw["w_ih"].T)                         # (F, 4Hp)
    whh = pad_gate_cols(raw["w_hh"].T)                         # (H, 4Hp)
    whh = jnp.pad(whh, ((0, Hp - H), (0, 0)))                  # (Hp, 4Hp)
    b = (raw["b_ih"] + raw["b_hh"]).reshape(4, H)
    b = jnp.pad(b, ((0, 0), (0, Hp - H))).reshape(1, 4 * Hp)   # (1, 4Hp)

    # linear_hid -> eval-mode dropout (identity) -> linear_out == one affine map.
    wc = raw["w_hid"].T @ raw["w_out"].T                       # (H, Y)
    bc = raw["b_hid"] @ raw["w_out"].T + raw["b_out"]          # (Y,)
    wc = jnp.pad(wc, ((0, Hp - H), (0, Yp - y_dim)))           # (Hp, Yp)
    bc = jnp.pad(bc, (0, Yp - y_dim)).reshape(1, Yp)           # (1, Yp)

    return {
        "wih": wih.astype(jnp.bfloat16),
        "whh": whh.astype(jnp.bfloat16),
        "b": b.astype(jnp.float32),
        "wc": wc.astype(jnp.bfloat16),
        "bc": bc.astype(jnp.float32),
    }


# ---------------------------------------------------------------------------
# Pure-JAX f32 reference (same math as the PyTorch module, state_comb='last')
# ---------------------------------------------------------------------------
def reference_forward(x_btf, raw):
    H = raw["w_hh"].shape[1]
    wih_t = raw["w_ih"].T
    whh_t = raw["w_hh"].T
    b = raw["b_ih"] + raw["b_hh"]

    def cell(carry, x_t):
        h, c = carry
        g = x_t @ wih_t + h @ whh_t + b
        i_g = jax.nn.sigmoid(g[:, 0 * H:1 * H])
        f_g = jax.nn.sigmoid(g[:, 1 * H:2 * H])
        g_g = jnp.tanh(g[:, 2 * H:3 * H])
        o_g = jax.nn.sigmoid(g[:, 3 * H:4 * H])
        c = f_g * c + i_g * g_g
        h = o_g * jnp.tanh(c)
        return (h, c), None

    B = x_btf.shape[0]
    h0 = jnp.zeros((B, H), jnp.float32)
    (h, _), _ = lax.scan(cell, (h0, h0), jnp.transpose(x_btf, (1, 0, 2)))
    z = h @ raw["w_hid"].T + raw["b_hid"]
    return z @ raw["w_out"].T + raw["b_out"]


if __name__ == "__main__":
    B, T, F, H, Y = 2, 8, 16, 32, 4   # batch, seq, feat_dim, hid_dim, y_dim

    key = jax.random.PRNGKey(0)
    kx, kp = jax.random.split(key)
    x = jax.random.normal(kx, (B, T, F), jnp.float32)

    raw = init_raw_params(kp, F, H, Y)
    kparams = pack_params(raw, H, Y)

    out = lstm_net_forward(x, kparams, y_dim=Y, t_chunk=4)
    out = jax.block_until_ready(out)

    ref = reference_forward(x, raw)
    assert out.shape == (B, Y), out.shape
    # bf16 MXU operands (f32 accumulate) -> looser tolerance vs pure-f32 reference.
    assert jnp.allclose(out, ref, rtol=2e-2, atol=2e-2), (out, ref)

    print("KERNEL_OK")
</pallas_src>

<mosaic_0001>
module attributes {stable_mosaic.version = 11 : i64} {
  func.func @_lstm_kernel(%arg0: i32, %arg1: memref<32x16xbf16, #tpu.memory_space<vmem>>, %arg2: memref<16x512xbf16, #tpu.memory_space<vmem>>, %arg3: memref<128x512xbf16, #tpu.memory_space<vmem>>, %arg4: memref<1x512xf32, #tpu.memory_space<vmem>>, %arg5: memref<128x128xbf16, #tpu.memory_space<vmem>>, %arg6: memref<1x128xf32, #tpu.memory_space<vmem>>, %arg7: memref<8x128xf32, #tpu.memory_space<vmem>>, %arg8: memref<8x128xf32, #tpu.memory_space<vmem>>, %arg9: memref<8x128xf32, #tpu.memory_space<vmem>>) attributes {dimension_semantics = [#tpu.dimension_semantics<arbitrary>], iteration_bounds = array<i64: 2>, scalar_prefetch = 0 : i64, scratch_operands = 2 : i64, tpu.core_type = #tpu.core_type<tc>, window_params = [{transform_indices = @transform_0, window_bounds = array<i64: 32, 16>}, {pipeline_mode = #tpu.pipeline_mode<synchronous>, transform_indices = @transform_1, window_bounds = array<i64: 16, 512>}, {pipeline_mode = #tpu.pipeline_mode<synchronous>, transform_indices = @transform_2, window_bounds = array<i64: 128, 512>}, {pipeline_mode = #tpu.pipeline_mode<synchronous>, transform_indices = @transform_3, window_bounds = array<i64: 1, 512>}, {pipeline_mode = #tpu.pipeline_mode<synchronous>, transform_indices = @transform_4, window_bounds = array<i64: 128, 128>}, {pipeline_mode = #tpu.pipeline_mode<synchronous>, transform_indices = @transform_5, window_bounds = array<i64: 1, 128>}, {pipeline_mode = #tpu.pipeline_mode<synchronous>, transform_indices = @transform_6, window_bounds = array<i64: 8, 128>}]} {
    %c0_i32 = arith.constant 0 : i32
    %0 = arith.cmpi eq, %arg0, %c0_i32 : i32
    %1 = arith.extui %0 : i1 to i32
    %c0_i32_0 = arith.constant 0 : i32
    %2 = arith.cmpi ne, %1, %c0_i32_0 : i32
    scf.if %2 {
      %cst_33 = arith.constant 0.000000e+00 : f32
      %133 = vector.broadcast %cst_33 : f32 to vector<8x128xf32>
      %c0_34 = arith.constant 0 : index
      %c0_35 = arith.constant 0 : index
      %134 = vector.load %arg8[%c0_34, %c0_35] : memref<8x128xf32, #tpu.memory_space<vmem>>, vector<8x128xf32>
      tpu.vector_store %arg8[%c0_34, %c0_35], %133 {strides = array<i32>} : memref<8x128xf32, #tpu.memory_space<vmem>>, vector<8x128xf32>,
      %cst_36 = arith.constant 0.000000e+00 : f32
      %135 = vector.broadcast %cst_36 : f32 to vector<8x128xf32>
      %c0_37 = arith.constant 0 : index
      %c0_38 = arith.constant 0 : index
      %136 = vector.load %arg9[%c0_37, %c0_38] : memref<8x128xf32, #tpu.memory_space<vmem>>, vector<8x128xf32>
      tpu.vector_store %arg9[%c0_37, %c0_38], %135 {strides = array<i32>} : memref<8x128xf32, #tpu.memory_space<vmem>>, vector<8x128xf32>,
    } else {
    }
    %c0 = arith.constant 0 : index
    %c0_1 = arith.constant 0 : index
    %3 = vector.load %arg1[%c0, %c0_1] : memref<32x16xbf16, #tpu.memory_space<vmem>>, vector<32x16xbf16>
    %c0_2 = arith.constant 0 : index
    %c0_3 = arith.constant 0 : index
    %4 = vector.load %arg2[%c0_2, %c0_3] : memref<16x512xbf16, #tpu.memory_space<vmem>>, vector<16x512xbf16>
    %cst = arith.constant dense<0.000000e+00> : vector<32x512xf32>
    %5 = tpu.matmul %3, %4, %cst {dimension_numbers = #tpu.dot_dimension_numbers<[1], [0], [0], [1], [0, 0, 1, 1], [], []>} : vector<32x16xbf16>, vector<16x512xbf16>, vector<32x512xf32> -> vector<32x512xf32>
    %c0_4 = arith.constant 0 : index
    %c0_5 = arith.constant 0 : index
    %6 = vector.load %arg4[%c0_4, %c0_5] : memref<1x512xf32, #tpu.memory_space<vmem>>, vector<1x512xf32>
    %7 = vector.broadcast %6 : vector<1x512xf32> to vector<32x512xf32>
    %8 = arith.addf %5, %7 : vector<32x512xf32>
    %c0_6 = arith.constant 0 : index
    %c0_7 = arith.constant 0 : index
    %9 = vector.load %arg3[%c0_6, %c0_7] : memref<128x512xbf16, #tpu.memory_space<vmem>>, vector<128x512xbf16>
    %c0_8 = arith.constant 0 : index
    %c0_9 = arith.constant 0 : index
    %10 = vector.load %arg8[%c0_8, %c0_9] : memref<8x128xf32, #tpu.memory_space<vmem>>, vector<8x128xf32>
    %c0_10 = arith.constant 0 : index
    %c0_11 = arith.constant 0 : index
    %11 = vector.load %arg9[%c0_10, %c0_11] : memref<8x128xf32, #tpu.memory_space<vmem>>, vector<8x128xf32>
    %12 = vector.extract_strided_slice %8 {offsets = [0, 0], sizes = [8, 512], strides = [1, 1]} : vector<32x512xf32> to vector<8x512xf32>
    %13 = arith.truncf %10 : vector<8x128xf32> to vector<8x128xbf16>
    %cst_12 = arith.constant dense<0.000000e+00> : vector<8x512xf32>
    %14 = tpu.matmul %13, %9, %cst_12 {dimension_numbers = #tpu.dot_dimension_numbers<[1], [0], [0], [1], [0, 0, 1, 1], [], []>} : vector<8x128xbf16>, vector<128x512xbf16>, vector<8x512xf32> -> vector<8x512xf32>
    %15 = arith.addf %12, %14 : vector<8x512xf32>
    %16 = vector.extract_strided_slice %15 {offsets = [0, 0], sizes = [8, 128], strides = [1, 1]} : vector<8x512xf32> to vector<8x128xf32>
    %17 = arith.negf %16 : vector<8x128xf32>
    %18 = math.exp %17 : vector<8x128xf32>
    %cst_13 = arith.constant 1.000000e+00 : f32
    %19 = vector.broadcast %cst_13 : f32 to vector<8x128xf32>
    %20 = arith.addf %19, %18 : vector<8x128xf32>
    %21 = arith.divf %19, %20 : vector<8x128xf32>
    %22 = vector.extract_strided_slice %15 {offsets = [0, 128], sizes = [8, 128], strides = [1, 1]} : vector<8x512xf32> to vector<8x128xf32>
    %23 = arith.negf %22 : vector<8x128xf32>
    %24 = math.exp %23 : vector<8x128xf32>
    %cst_14 = arith.constant 1.000000e+00 : f32
    %25 = vector.broadcast %cst_14 : f32 to vector<8x128xf32>
    %26 = arith.addf %25, %24 : vector<8x128xf32>
    %27 = arith.divf %25, %26 : vector<8x128xf32>
    %28 = vector.extract_strided_slice %15 {offsets = [0, 256], sizes = [8, 128], strides = [1, 1]} : vector<8x512xf32> to vector<8x128xf32>
    %29 = math.tanh %28 : vector<8x128xf32>
    %30 = vector.extract_strided_slice %15 {offsets = [0, 384], sizes = [8, 128], strides = [1, 1]} : vector<8x512xf32> to vector<8x128xf32>
    %31 = arith.negf %30 : vector<8x128xf32>
    %32 = math.exp %31 : vector<8x128xf32>
    %cst_15 = arith.constant 1.000000e+00 : f32
    %33 = vector.broadcast %cst_15 : f32 to vector<8x128xf32>
    %34 = arith.addf %33, %32 : vector<8x128xf32>
    %35 = arith.divf %33, %34 : vector<8x128xf32>
    %36 = arith.mulf %27, %11 : vector<8x128xf32>
    %37 = arith.mulf %21, %29 : vector<8x128xf32>
    %38 = arith.addf %36, %37 : vector<8x128xf32>
    %39 = math.tanh %38 : vector<8x128xf32>
    %40 = arith.mulf %35, %39 : vector<8x128xf32>
    %41 = vector.extract_strided_slice %8 {offsets = [8, 0], sizes = [8, 512], strides = [1, 1]} : vector<32x512xf32> to vector<8x512xf32>
    %42 = arith.truncf %40 : vector<8x128xf32> to vector<8x128xbf16>
    %cst_16 = arith.constant dense<0.000000e+00> : vector<8x512xf32>
    %43 = tpu.matmul %42, %9, %cst_16 {dimension_numbers = #tpu.dot_dimension_numbers<[1], [0], [0], [1], [0, 0, 1, 1], [], []>} : vector<8x128xbf16>, vector<128x512xbf16>, vector<8x512xf32> -> vector<8x512xf32>
    %44 = arith.addf %41, %43 : vector<8x512xf32>
    %45 = vector.extract_strided_slice %44 {offsets = [0, 0], sizes = [8, 128], strides = [1, 1]} : vector<8x512xf32> to vector<8x128xf32>
    %46 = arith.negf %45 : vector<8x128xf32>
    %47 = math.exp %46 : vector<8x128xf32>
    %cst_17 = arith.constant 1.000000e+00 : f32
    %48 = vector.broadcast %cst_17 : f32 to vector<8x128xf32>
    %49 = arith.addf %48, %47 : vector<8x128xf32>
    %50 = arith.divf %48, %49 : vector<8x128xf32>
    %51 = vector.extract_strided_slice %44 {offsets = [0, 128], sizes = [8, 128], strides = [1, 1]} : vector<8x512xf32> to vector<8x128xf32>
    %52 = arith.negf %51 : vector<8x128xf32>
    %53 = math.exp %52 : vector<8x128xf32>
    %cst_18 = arith.constant 1.000000e+00 : f32
    %54 = vector.broadcast %cst_18 : f32 to vector<8x128xf32>
    %55 = arith.addf %54, %53 : vector<8x128xf32>
    %56 = arith.divf %54, %55 : vector<8x128xf32>
    %57 = vector.extract_strided_slice %44 {offsets = [0, 256], sizes = [8, 128], strides = [1, 1]} : vector<8x512xf32> to vector<8x128xf32>
    %58 = math.tanh %57 : vector<8x128xf32>
    %59 = vector.extract_strided_slice %44 {offsets = [0, 384], sizes = [8, 128], strides = [1, 1]} : vector<8x512xf32> to vector<8x128xf32>
    %60 = arith.negf %59 : vector<8x128xf32>
    %61 = math.exp %60 : vector<8x128xf32>
    %cst_19 = arith.constant 1.000000e+00 : f32
    %62 = vector.broadcast %cst_19 : f32 to vector<8x128xf32>
    %63 = arith.addf %62, %61 : vector<8x128xf32>
    %64 = arith.divf %62, %63 : vector<8x128xf32>
    %65 = arith.mulf %56, %38 : vector<8x128xf32>
    %66 = arith.mulf %50, %58 : vector<8x128xf32>
    %67 = arith.addf %65, %66 : vector<8x128xf32>
    %68 = math.tanh %67 : vector<8x128xf32>
    %69 = arith.mulf %64, %68 : vector<8x128xf32>
    %70 = vector.extract_strided_slice %8 {offsets = [16, 0], sizes = [8, 512], strides = [1, 1]} : vector<32x512xf32> to vector<8x512xf32>
    %71 = arith.truncf %69 : vector<8x128xf32> to vector<8x128xbf16>
    %cst_20 = arith.constant dense<0.000000e+00> : vector<8x512xf32>
    %72 = tpu.matmul %71, %9, %cst_20 {dimension_numbers = #tpu.dot_dimension_numbers<[1], [0], [0], [1], [0, 0, 1, 1], [], []>} : vector<8x128xbf16>, vector<128x512xbf16>, vector<8x512xf32> -> vector<8x512xf32>
    %73 = arith.addf %70, %72 : vector<8x512xf32>
    %74 = vector.extract_strided_slice %73 {offsets = [0, 0], sizes = [8, 128], strides = [1, 1]} : vector<8x512xf32> to vector<8x128xf32>
    %75 = arith.negf %74 : vector<8x128xf32>
    %76 = math.exp %75 : vector<8x128xf32>
    %cst_21 = arith.constant 1.000000e+00 : f32
    %77 = vector.broadcast %cst_21 : f32 to vector<8x128xf32>
    %78 = arith.addf %77, %76 : vector<8x128xf32>
    %79 = arith.divf %77, %78 : vector<8x128xf32>
    %80 = vector.extract_strided_slice %73 {offsets = [0, 128], sizes = [8, 128], strides = [1, 1]} : vector<8x512xf32> to vector<8x128xf32>
    %81 = arith.negf %80 : vector<8x128xf32>
    %82 = math.exp %81 : vector<8x128xf32>
    %cst_22 = arith.constant 1.000000e+00 : f32
    %83 = vector.broadcast %cst_22 : f32 to vector<8x128xf32>
    %84 = arith.addf %83, %82 : vector<8x128xf32>
    %85 = arith.divf %83, %84 : vector<8x128xf32>
    %86 = vector.extract_strided_slice %73 {offsets = [0, 256], sizes = [8, 128], strides = [1, 1]} : vector<8x512xf32> to vector<8x128xf32>
    %87 = math.tanh %86 : vector<8x128xf32>
    %88 = vector.extract_strided_slice %73 {offsets = [0, 384], sizes = [8, 128], strides = [1, 1]} : vector<8x512xf32> to vector<8x128xf32>
    %89 = arith.negf %88 : vector<8x128xf32>
    %90 = math.exp %89 : vector<8x128xf32>
    %cst_23 = arith.constant 1.000000e+00 : f32
    %91 = vector.broadcast %cst_23 : f32 to vector<8x128xf32>
    %92 = arith.addf %91, %90 : vector<8x128xf32>
    %93 = arith.divf %91, %92 : vector<8x128xf32>
    %94 = arith.mulf %85, %67 : vector<8x128xf32>
    %95 = arith.mulf %79, %87 : vector<8x128xf32>
    %96 = arith.addf %94, %95 : vector<8x128xf32>
    %97 = math.tanh %96 : vector<8x128xf32>
    %98 = arith.mulf %93, %97 : vector<8x128xf32>
    %99 = vector.extract_strided_slice %8 {offsets = [24, 0], sizes = [8, 512], strides = [1, 1]} : vector<32x512xf32> to vector<8x512xf32>
    %100 = arith.truncf %98 : vector<8x128xf32> to vector<8x128xbf16>
    %cst_24 = arith.constant dense<0.000000e+00> : vector<8x512xf32>
    %101 = tpu.matmul %100, %9, %cst_24 {dimension_numbers = #tpu.dot_dimension_numbers<[1], [0], [0], [1], [0, 0, 1, 1], [], []>} : vector<8x128xbf16>, vector<128x512xbf16>, vector<8x512xf32> -> vector<8x512xf32>
    %102 = arith.addf %99, %101 : vector<8x512xf32>
    %103 = vector.extract_strided_slice %102 {offsets = [0, 0], sizes = [8, 128], strides = [1, 1]} : vector<8x512xf32> to vector<8x128xf32>
    %104 = arith.negf %103 : vector<8x128xf32>
    %105 = math.exp %104 : vector<8x128xf32>
    %cst_25 = arith.constant 1.000000e+00 : f32
    %106 = vector.broadcast %cst_25 : f32 to vector<8x128xf32>
    %107 = arith.addf %106, %105 : vector<8x128xf32>
    %108 = arith.divf %106, %107 : vector<8x128xf32>
    %109 = vector.extract_strided_slice %102 {offsets = [0, 128], sizes = [8, 128], strides = [1, 1]} : vector<8x512xf32> to vector<8x128xf32>
    %110 = arith.negf %109 : vector<8x128xf32>
    %111 = math.exp %110 : vector<8x128xf32>
    %cst_26 = arith.constant 1.000000e+00 : f32
    %112 = vector.broadcast %cst_26 : f32 to vector<8x128xf32>
    %113 = arith.addf %112, %111 : vector<8x128xf32>
    %114 = arith.divf %112, %113 : vector<8x128xf32>
    %115 = vector.extract_strided_slice %102 {offsets = [0, 256], sizes = [8, 128], strides = [1, 1]} : vector<8x512xf32> to vector<8x128xf32>
    %116 = math.tanh %115 : vector<8x128xf32>
    %117 = vector.extract_strided_slice %102 {offsets = [0, 384], sizes = [8, 128], strides = [1, 1]} : vector<8x512xf32> to vector<8x128xf32>
    %118 = arith.negf %117 : vector<8x128xf32>
    %119 = math.exp %118 : vector<8x128xf32>
    %cst_27 = arith.constant 1.000000e+00 : f32
    %120 = vector.broadcast %cst_27 : f32 to vector<8x128xf32>
    %121 = arith.addf %120, %119 : vector<8x128xf32>
    %122 = arith.divf %120, %121 : vector<8x128xf32>
    %123 = arith.mulf %114, %96 : vector<8x128xf32>
    %124 = arith.mulf %108, %116 : vector<8x128xf32>
    %125 = arith.addf %123, %124 : vector<8x128xf32>
    %126 = math.tanh %125 : vector<8x128xf32>
    %127 = arith.mulf %122, %126 : vector<8x128xf32>
    %c0_28 = arith.constant 0 : index
    %c0_29 = arith.constant 0 : index
    %128 = vector.load %arg8[%c0_28, %c0_29] : memref<8x128xf32, #tpu.memory_space<vmem>>, vector<8x128xf32>
    tpu.vector_store %arg8[%c0_28, %c0_29], %127 {strides = array<i32>} : memref<8x128xf32, #tpu.memory_space<vmem>>, vector<8x128xf32>,
    %c0_30 = arith.constant 0 : index
    %c0_31 = arith.constant 0 : index
    %129 = vector.load %arg9[%c0_30, %c0_31] : memref<8x128xf32, #tpu.memory_space<vmem>>, vector<8x128xf32>
    tpu.vector_store %arg9[%c0_30, %c0_31], %125 {strides = array<i32>} : memref<8x128xf32, #tpu.memory_space<vmem>>, vector<8x128xf32>,
    %c1_i32 = arith.constant 1 : i32
    %130 = arith.cmpi eq, %arg0, %c1_i32 : i32
    %131 = arith.extui %130 : i1 to i32
    %c0_i32_32 = arith.constant 0 : i32
    %132 = arith.cmpi ne, %131, %c0_i32_32 : i32
    scf.if %132 {
      %133 = arith.truncf %127 : vector<8x128xf32> to vector<8x128xbf16>
      %c0_33 = arith.constant 0 : index
      %c0_34 = arith.constant 0 : index
      %134 = vector.load %arg5[%c0_33, %c0_34] : memref<128x128xbf16, #tpu.memory_space<vmem>>, vector<128x128xbf16>
      %cst_35 = arith.constant dense<0.000000e+00> : vector<8x128xf32>
      %135 = tpu.matmul %133, %134, %cst_35 {dimension_numbers = #tpu.dot_dimension_numbers<[1], [0], [0], [1], [0, 0, 1, 1], [], []>} : vector<8x128xbf16>, vector<128x128xbf16>, vector<8x128xf32> -> vector<8x128xf32>
      %c0_36 = arith.constant 0 : index
      %c0_37 = arith.constant 0 : index
      %136 = vector.load %arg6[%c0_36, %c0_37] : memref<1x128xf32, #tpu.memory_space<vmem>>, vector<1x128xf32>
      %137 = vector.broadcast %136 : vector<1x128xf32> to vector<8x128xf32>
      %138 = arith.addf %135, %137 : vector<8x128xf32>
      %c0_38 = arith.constant 0 : index
      %c0_39 = arith.constant 0 : index
      %139 = vector.load %arg7[%c0_38, %c0_39] : memref<8x128xf32, #tpu.memory_space<vmem>>, vector<8x128xf32>
      tpu.vector_store %arg7[%c0_38, %c0_39], %138 {strides = array<i32>} : memref<8x128xf32, #tpu.memory_space<vmem>>, vector<8x128xf32>,
    } else {
    }
    return
  }
  func.func @transform_0(%arg0: i32) -> (i32, i32) {
    %c0_i32 = arith.constant 0 : i32
    %c0_i32_0 = arith.constant 0 : i32
    return %arg0, %c0_i32 : i32, i32
  }
  func.func @transform_1(%arg0: i32) -> (i32, i32) {
    %c0_i32 = arith.constant 0 : i32
    %c0_i32_0 = arith.constant 0 : i32
    %c0_i32_1 = arith.constant 0 : i32
    return %c0_i32, %c0_i32_0 : i32, i32
  }
  func.func @transform_2(%arg0: i32) -> (i32, i32) {
    %c0_i32 = arith.constant 0 : i32
    %c0_i32_0 = arith.constant 0 : i32
    %c0_i32_1 = arith.constant 0 : i32
    return %c0_i32, %c0_i32_0 : i32, i32
  }
  func.func @transform_3(%arg0: i32) -> (i32, i32) {
    %c0_i32 = arith.constant 0 : i32
    %c0_i32_0 = arith.constant 0 : i32
    %c0_i32_1 = arith.constant 0 : i32
    return %c0_i32, %c0_i32_0 : i32, i32
  }
  func.func @transform_4(%arg0: i32) -> (i32, i32) {
    %c0_i32 = arith.constant 0 : i32
    %c0_i32_0 = arith.constant 0 : i32
    %c0_i32_1 = arith.constant 0 : i32
    return %c0_i32, %c0_i32_0 : i32, i32
  }
  func.func @transform_5(%arg0: i32) -> (i32, i32) {
    %c0_i32 = arith.constant 0 : i32
    %c0_i32_0 = arith.constant 0 : i32
    %c0_i32_1 = arith.constant 0 : i32
    return %c0_i32, %c0_i32_0 : i32, i32
  }
  func.func @transform_6(%arg0: i32) -> (i32, i32) {
    %c0_i32 = arith.constant 0 : i32
    %c0_i32_0 = arith.constant 0 : i32
    %c0_i32_1 = arith.constant 0 : i32
    return %c0_i32, %c0_i32_0 : i32, i32
  }
}

</mosaic_0001>

<llo_original>
// kernel: lstm_net_forward.1
$region0: #{lstm_net_forward.1}
  #allocation0 [shape = 'u32[]', space=smem, size = 0x4, offset = 0x4, fixed_abs, tag = 'smem constant byte address 0x4 - core index']
  #allocation1 [shape = 'u32[144,128]{1,0:T(1,128)}', space=vmem, size = 0x12000, scoped, tag = 'internal scratch']
  #allocation2 [shape = 'f32[8,128]{1,0:T(8,128)}', space=vmem, size = 0x1000, scoped, tag = 'scratch operand']
  #allocation3 [shape = 'f32[8,128]{1,0:T(8,128)}', space=vmem, size = 0x1000, scoped, tag = 'scratch operand']
  %s0 = inlined_call_operand.vmem [shape: bf16[64,16], index: 0, kind: input, shape index: {}]
  %s1 = inlined_call_operand.vmem [shape: bf16[16,512], index: 1, kind: input, shape index: {}]
  %s2 = inlined_call_operand.hbm [shape: bf16[128,512], index: 2, kind: input, shape index: {}]
  %s3 = inlined_call_operand.hbm [shape: f32[1,512], index: 3, kind: input, shape index: {}]
  %s4 = inlined_call_operand.vmem [shape: bf16[128,128], index: 4, kind: input, shape index: {}]
  %s5 = inlined_call_operand.vmem [shape: f32[1,128], index: 5, kind: input, shape index: {}]
  %s6 = inlined_call_operand.vmem [shape: f32[8,128], index: 6, kind: output, shape index: {}]
  %s7 = sld [smem:[#allocation0]]
  $region73: #{lstm_net_forward.1} parent=0
    _
  %s9 = ssub.s32 1, %s7
  %s10 = scalar_select 0, %s9, %s7
  $region1: #{lstm_net_forward.1} parent=0
    #allocation4 [shape = 'u8[131072]{0}', space=vmem, size = 0x20000, scoped, tag = 'input window, operand 2, single buffered']
    #allocation5 [shape = 's32[2]{0}', space=sflag, size = 0x8, scoped, tag = 'scoped memory for lstm_net_forward.1']
    #allocation6 [shape = 'u8[2048]{0}', space=vmem, size = 0x800, scoped, tag = 'input window, operand 3, single buffered']
    #allocation7 [shape = 's32[1]{0}', space=sflag, size = 0x4, scoped, tag = 'scoped memory for lstm_net_forward.1']
    %11 = vsyncpa [#allocation5], 0
    %12 = vsyncpa [#allocation7], 0
    loop: start=0, step=1, limit=4
    $region2: #{lstm_net_forward.1} parent=1 // loop_pre_header
      _
    $region3: #{lstm_net_forward.1} parent=1 // loop_header
      %s14 = sphi 0, %s18
      %p15 = scmp.ge.s32.totalorder %s14, 4
      %s24 = sphi 0, %s26
      %s27 = sphi 0, %s24
      %s28 = sphi 0, %s27
      %s44 = sphi 0, %s28
      %s48 = sphi 0, %s48
      %s50 = sphi 0, %s48
      %s51 = sphi 0, %s50
      %s65 = sphi 0, %s51
      %s69 = sphi 0, %s69
      %s71 = sphi 0, %s69
      %s72 = sphi 0, %s71
      %s86 = sphi 0, %s72
      %s90 = sphi 0, %s90
      %s92 = sphi 0, %s90
      %s93 = sphi 0, %s92
      %s107 = sphi 0, %s93
      %s111 = sphi 0, %s111
      %s113 = sphi 0, %s111
      %s114 = sphi 0, %s113
      %s128 = sphi 0, %s114
      %s132 = sphi 0, %s132
      %s134 = sphi 0, %s132
      %s135 = sphi 0, %s134
      %s149 = sphi 0, %s135
      %s153 = sphi 0, %s153
      %s155 = sphi 0, %s153
      %s156 = sphi 0, %s155
      %s170 = sphi 0, %s156
    $region4: #{lstm_net_forward.1} parent=1 // loop_header_branch
      %17 = sbr.rel (%p15) target = $region8
    $region5: #{lstm_net_forward.1} parent=1 // loop_body
      %s19 = ssub.s32 %s14, 1
      %s20 = ssub.s32 %s14, 2
      %s21 = sadd.s32 %s14, 1
      %s22 = ssub.s32 %s14, %s21
      %p23 = scmp.eq.s32.totalorder %s22, 0
      %s25 = sadd.s32 %s24, 1
      %s26 = scalar_select %p23, %s24, %s25
      %p29 = pneg %p23
      %p30 = scmp.eq.s32.totalorder %s14, 1
      %p31 = por %p29, %p30
      %p32 = scmp.ne.s32.totalorder %s24, %s27
      %p33 = scmp.eq.s32.totalorder %s14, 0
      %p34 = por %p32, %p33
      %p35 = scmp.ne.s32.totalorder %s24, %s27
      %p36 = scmp.eq.s32.totalorder %s19, 1
      %p37 = por %p35, %p36
      %p38 = scmp.ne.s32.totalorder %s27, %s28
      %p39 = scmp.eq.s32.totalorder %s19, 0
      %p40 = por %p38, %p39
      %p41 = scmp.ne.s32.totalorder %s27, %s28
      %p42 = scmp.eq.s32.totalorder %s20, 1
      %p43 = por %p41, %p42
      %p45 = scmp.ne.s32.totalorder %s28, %s44
      %p46 = scmp.eq.s32.totalorder %s20, 0
      %p47 = por %p45, %p46
      %s49 = sadd.s32 %s48, 1
      %p52 = scmp.eq.s32.totalorder %s14, 1
      %p53 = scmp.ne.s32.totalorder %s48, %s50
      %p54 = scmp.eq.s32.totalorder %s14, 0
      %p55 = por %p53, %p54
      %p56 = scmp.ne.s32.totalorder %s48, %s50
      %p57 = scmp.eq.s32.totalorder %s19, 1
      %p58 = por %p56, %p57
      %p59 = scmp.ne.s32.totalorder %s50, %s51
      %p60 = scmp.eq.s32.totalorder %s19, 0
      %p61 = por %p59, %p60
      %p62 = scmp.ne.s32.totalorder %s50, %s51
      %p63 = scmp.eq.s32.totalorder %s20, 1
      %p64 = por %p62, %p63
      %p66 = scmp.ne.s32.totalorder %s51, %s65
      %p67 = scmp.eq.s32.totalorder %s20, 0
      %p68 = por %p66, %p67
      %s70 = sadd.s32 %s69, 1
      %p73 = scmp.eq.s32.totalorder %s14, 1
      %p74 = scmp.ne.s32.totalorder %s69, %s71
      %p75 = scmp.eq.s32.totalorder %s14, 0
      %p76 = por %p74, %p75
      %p77 = scmp.ne.s32.totalorder %s69, %s71
      %p78 = scmp.eq.s32.totalorder %s19, 1
      %p79 = por %p77, %p78
      %p80 = scmp.ne.s32.totalorder %s71, %s72
      %p81 = scmp.eq.s32.totalorder %s19, 0
      %p82 = por %p80, %p81
      %p83 = scmp.ne.s32.totalorder %s71, %s72
      %p84 = scmp.eq.s32.totalorder %s20, 1
      %p85 = por %p83, %p84
      %p87 = scmp.ne.s32.totalorder %s72, %s86
      %p88 = scmp.eq.s32.totalorder %s20, 0
      %p89 = por %p87, %p88
      %s91 = sadd.s32 %s90, 1
      %p94 = scmp.eq.s32.totalorder %s14, 1
      %p95 = scmp.ne.s32.totalorder %s90, %s92
      %p96 = scmp.eq.s32.totalorder %s14, 0
      %p97 = por %p95, %p96
      %p98 = scmp.ne.s32.totalorder %s90, %s92
      %p99 = scmp.eq.s32.totalorder %s19, 1
      %p100 = por %p98, %p99
      %p101 = scmp.ne.s32.totalorder %s92, %s93
      %p102 = scmp.eq.s32.totalorder %s19, 0
      %p103 = por %p101, %p102
      %p104 = scmp.ne.s32.totalorder %s92, %s93
      %p105 = scmp.eq.s32.totalorder %s20, 1
      %p106 = por %p104, %p105
      %p108 = scmp.ne.s32.totalorder %s93, %s107
      %p109 = scmp.eq.s32.totalorder %s20, 0
      %p110 = por %p108, %p109
      %s112 = sadd.s32 %s111, 1
      %p115 = scmp.eq.s32.totalorder %s14, 1
      %p116 = scmp.ne.s32.totalorder %s111, %s113
      %p117 = scmp.eq.s32.totalorder %s14, 0
      %p118 = por %p116, %p117
      %p119 = scmp.ne.s32.totalorder %s111, %s113
      %p120 = scmp.eq.s32.totalorder %s19, 1
      %p121 = por %p119, %p120
      %p122 = scmp.ne.s32.totalorder %s113, %s114
      %p123 = scmp.eq.s32.totalorder %s19, 0
      %p124 = por %p122, %p123
      %p125 = scmp.ne.s32.totalorder %s113, %s114
      %p126 = scmp.eq.s32.totalorder %s20, 1
      %p127 = por %p125, %p126
      %p129 = scmp.ne.s32.totalorder %s114, %s128
      %p130 = scmp.eq.s32.totalorder %s20, 0
      %p131 = por %p129, %p130
      %s133 = sadd.s32 %s132, 1
      %p136 = scmp.eq.s32.totalorder %s14, 1
      %p137 = scmp.ne.s32.totalorder %s132, %s134
      %p138 = scmp.eq.s32.totalorder %s14, 0
      %p139 = por %p137, %p138
      %p140 = scmp.ne.s32.totalorder %s132, %s134
      %p141 = scmp.eq.s32.totalorder %s19, 1
      %p142 = por %p140, %p141
      %p143 = scmp.ne.s32.totalorder %s134, %s135
      %p144 = scmp.eq.s32.totalorder %s19, 0
      %p145 = por %p143, %p144
      %p146 = scmp.ne.s32.totalorder %s134, %s135
      %p147 = scmp.eq.s32.totalorder %s20, 1
      %p148 = por %p146, %p147
      %p150 = scmp.ne.s32.totalorder %s135, %s149
      %p151 = scmp.eq.s32.totalorder %s20, 0
      %p152 = por %p150, %p151
      %s154 = sadd.s32 %s153, 1
      %p157 = scmp.eq.s32.totalorder %s14, 1
      %p158 = scmp.ne.s32.totalorder %s153, %s155
      %p159 = scmp.eq.s32.totalorder %s14, 0
      %p160 = por %p158, %p159
      %p161 = scmp.ne.s32.totalorder %s153, %s155
      %p162 = scmp.eq.s32.totalorder %s19, 1
      %p163 = por %p161, %p162
      %p164 = scmp.ne.s32.totalorder %s155, %s156
      %p165 = scmp.eq.s32.totalorder %s19, 0
      %p166 = por %p164, %p165
      %p167 = scmp.ne.s32.totalorder %s155, %s156
      %p168 = scmp.eq.s32.totalorder %s20, 1
      %p169 = por %p167, %p168
      %p171 = scmp.ne.s32.totalorder %s156, %s170
      %p172 = scmp.eq.s32.totalorder %s20, 0
      %p173 = por %p171, %p172
      %p174 = scmp.le.s32.totalorder 1, %s14
      %p175 = scmp.lt.s32.totalorder %s14, 3
      %p176 = pnand %p174, %p175
      %p177 = pneg %p176
      // Predicated region
      $region9: #{lstm_net_forward.1} parent=5 // pred_check
        _
      $region10: #{lstm_net_forward.1} parent=5 // pred_check_branch
        %179 = sbr.rel (%p176) target = $region12
      $region11: #{lstm_net_forward.1} parent=5 // pred_region
        %s180 = ssub.s32 %s14, 1
        // Predicated region
        $region13: #{lstm_net_forward.1} parent=11 // pred_check
          %p181 = pneg %p61
        $region14: #{lstm_net_forward.1} parent=11 // pred_check_branch
          %183 = sbr.rel (%p181) target = $region16
        $region15: #{lstm_net_forward.1} parent=11 // pred_region
          _
        $region16: #{lstm_net_forward.1} parent=11 // pred_fallthru
          _
        // Predicated region
        $region17: #{lstm_net_forward.1} parent=11 // pred_check
          %p184 = pneg %p82
        $region18: #{lstm_net_forward.1} parent=11 // pred_check_branch
          %186 = sbr.rel (%p184) target = $region20
        $region19: #{lstm_net_forward.1} parent=11 // pred_region
          %s188 = ssub.s32 4096, 4096
          %189 = vsyncadd [#allocation5], %s188
          %s190 = sshll.u32 [#allocation4], 4
          %s191 = int_to_ptr.vmem [resolvable:$true] %s190
          %196 = dma.hbm_to_vmem [thread:$0]  %s2, 4096, %s191, [#allocation5], 256, 256, 16
        $region20: #{lstm_net_forward.1} parent=11 // pred_fallthru
          _
        // Predicated region
        $region21: #{lstm_net_forward.1} parent=11 // pred_check
          %p197 = pneg %p103
        $region22: #{lstm_net_forward.1} parent=11 // pred_check_branch
          %199 = sbr.rel (%p197) target = $region24
        $region23: #{lstm_net_forward.1} parent=11 // pred_region
          %s201 = ssub.s32 64, 64
          %202 = vsyncadd [#allocation7], %s201
          %s204 = sshll.u32 [#allocation6], 4
          %s205 = int_to_ptr.vmem [resolvable:$true] %s204
          %207 = dma.hbm_to_vmem [thread:$0]  %s3, 64, %s205, [#allocation7]
        $region24: #{lstm_net_forward.1} parent=11 // pred_fallthru
          _
        // Predicated region
        $region25: #{lstm_net_forward.1} parent=11 // pred_check
          %p208 = pneg %p124
        $region26: #{lstm_net_forward.1} parent=11 // pred_check_branch
          %210 = sbr.rel (%p208) target = $region28
        $region27: #{lstm_net_forward.1} parent=11 // pred_region
          _
        $region28: #{lstm_net_forward.1} parent=11 // pred_fallthru
          _
        // Predicated region
        $region29: #{lstm_net_forward.1} parent=11 // pred_check
          %p211 = pneg %p145
        $region30: #{lstm_net_forward.1} parent=11 // pred_check_branch
          %213 = sbr.rel (%p211) target = $region32
        $region31: #{lstm_net_forward.1} parent=11 // pred_region
          _
        $region32: #{lstm_net_forward.1} parent=11 // pred_fallthru
          _
      $region12: #{lstm_net_forward.1} parent=5 // pred_fallthru
        _
      %p214 = scmp.lt.s32.totalorder %s14, 2
      // Predicated region
      $region33: #{lstm_net_forward.1} parent=5 // pred_check
        %p215 = pneg %p214
      $region34: #{lstm_net_forward.1} parent=5 // pred_check_branch
        %217 = sbr.rel (%p215) target = $region36
      $region35: #{lstm_net_forward.1} parent=5 // pred_region
        // Predicated region
        $region37: #{lstm_net_forward.1} parent=35 // pred_check
          %p218 = pneg %p34
        $region38: #{lstm_net_forward.1} parent=35 // pred_check_branch
          %220 = sbr.rel (%p218) target = $region40
        $region39: #{lstm_net_forward.1} parent=35 // pred_region
          %s221 = smul.u32 4, %s14
          %p222 = scmp.lt.s32.totalorder %s221, 7
          %s223 = scalar_select %p222, %s221, 7
          %s224 = smul.addr %s223, 4
          %s225 = scalar_lea.vmem %s0, %s224
          %s226 = smul.u32 4, %s14
        $region40: #{lstm_net_forward.1} parent=35 // pred_fallthru
          _
      $region36: #{lstm_net_forward.1} parent=5 // pred_fallthru
        _
      %p227 = scmp.le.s32.totalorder 1, %s14
      %p228 = scmp.lt.s32.totalorder %s14, 3
      %p229 = pnand %p227, %p228
      %p230 = pneg %p229
      // Predicated region
      $region41: #{lstm_net_forward.1} parent=5 // pred_check
        _
      $region42: #{lstm_net_forward.1} parent=5 // pred_check_branch
        %232 = sbr.rel (%p229) target = $region44
      $region43: #{lstm_net_forward.1} parent=5 // pred_region
        %s233 = ssub.s32 %s14, 1
        // Predicated region
        $region45: #{lstm_net_forward.1} parent=43 // pred_check
          %p234 = pneg %p82
        $region46: #{lstm_net_forward.1} parent=43 // pred_check_branch
          %236 = sbr.rel (%p234) target = $region48
        $region47: #{lstm_net_forward.1} parent=43 // pred_region
          %237 = dma.done [#allocation5], 4096
        $region48: #{lstm_net_forward.1} parent=43 // pred_fallthru
          _
        // Predicated region
        $region49: #{lstm_net_forward.1} parent=43 // pred_check
          %p238 = pneg %p103
        $region50: #{lstm_net_forward.1} parent=43 // pred_check_branch
          %240 = sbr.rel (%p238) target = $region52
        $region51: #{lstm_net_forward.1} parent=43 // pred_region
          %241 = dma.done [#allocation7], 64
        $region52: #{lstm_net_forward.1} parent=43 // pred_fallthru
          _
        %s242 = smul.u32 4, %s19
        %p243 = scmp.lt.s32.totalorder %s242, 7
        %s244 = scalar_select %p243, %s242, 7
        %s245 = smul.addr %s244, 4
        %s246 = scalar_lea.vmem %s0, %s245
        %p247 = pneg %p40
        %p248 = pneg %p37
        %p249 = pneg %p61
        %p250 = pneg %p58
        %p251 = pneg %p82
        %p252 = pneg %p79
        %p253 = pneg %p103
        %p254 = pneg %p100
        %p255 = pneg %p124
        %p256 = pneg %p121
        %p257 = pneg %p145
        %p258 = pneg %p142
        %p259 = pneg %p166
        %p260 = pneg %p163
        %s261 = smul.u32 4, %s19
        %p262 = scmp.lt.s32.totalorder %s261, 7
        %s263 = scalar_select %p262, %s261, 7
        %s264 = smul.addr %s263, 4
        %s265 = scalar_lea.vmem %s0, %s264
        %s266 = smul.u32 4, %s19
        %p268 = scmp.eq.s32.totalorder %s19, 0
        // Predicated region
        $region53: #{lstm_net_forward.1} parent=43 // pred_check
          %p269 = pneg %p268
        $region54: #{lstm_net_forward.1} parent=43 // pred_check_branch
          %271 = sbr.rel (%p269) target = $region56
        $region55: #{lstm_net_forward.1} parent=43 // pred_region
          %272 = vst [vmem:[#allocation2] sm:$0xff] 0.0
          %273 = vst [vmem:[#allocation3] sm:$0xff] 0.0
        $region56: #{lstm_net_forward.1} parent=43 // pred_fallthru
          _
        %v274 = vld [vmem:[%s265] sm:$0xf]
        %v275 = vld [vmem:[%s265 + $0x4] sm:$0xf]
        %v276 = vld [vmem:[%s265 + $0x8] sm:$0xf]
        %v277 = vld [vmem:[%s265 + $0xc] sm:$0xf]
        %v278 = vld [vmem:[%s1] sm:$0xff]
        %v279 = vld [vmem:[%s1 + $0x8] sm:$0xff]
        %v280 = vld [vmem:[%s1 + $0x10] sm:$0xff]
        %v281 = vld [vmem:[%s1 + $0x18] sm:$0xff]
        %v282 = vld [vmem:[#allocation6] sm:$0xf]
        %v284 = vlaneseq
        %v285 = vshrl.u32 %v284, 7
        %v286 = vsub.s32 0, %v285
        %v287 = vrot.slane %v282, %v286
        %v288 = vlaneseq
        %v289 = vshrl.u32 %v288, 7
        %v290 = vsub.s32 1, %v289
        %v291 = vrot.slane %v282, %v290
        %v292 = vlaneseq
        %v293 = vshrl.u32 %v292, 7
        %v294 = vsub.s32 2, %v293
        %v295 = vrot.slane %v282, %v294
        %v296 = vlaneseq
        %v297 = vshrl.u32 %v296, 7
        %v298 = vsub.s32 3, %v297
        %v299 = vrot.slane %v282, %v298
        %v308 = vunpack.c.l.b16 %v274
        %v309 = vunpack.c.l.b16 %v275
        %v310 = vunpack.c.l.b16 %v276
        %v311 = vunpack.c.l.b16 %v277
        %v312 = vpack.c.b16 %v309, %v308
        %v313 = vpack.c.b16 %v311, %v310
        %v318 = vunpack.c.l.b16 %v278
        %v319 = vunpack.c.h.b16 %v278
        %v320 = vunpack.c.l.b16 %v279
        %v321 = vunpack.c.h.b16 %v279
        %v322 = vunpack.c.l.b16 %v280
        %v323 = vunpack.c.h.b16 %v280
        %v324 = vunpack.c.l.b16 %v281
        %v325 = vunpack.c.h.b16 %v281
        %v326 = vpack.c.b16 %v322, %v318
        %v327 = vpack.c.b16 %v323, %v319
        %v328 = vpack.c.b16 %v324, %v320
        %v329 = vpack.c.b16 %v325, %v321
        %vm334 = vcmask 130048
        %v336 = vsel %vm334, %v312, 0
        %v339 = vsel %vm334, %v313, 0
        %341 = vmatprep.subr.bf16.mxu0 %v327
        %342 = vmatpush1.bf16.msra.mxu0 %v326
        %343 = vmatprep.subr.bf16.mxu0 0
        %344 = vmatpush1.bf16.msra.mxu0 0
        %345 = vmatprep.subr.bf16.mxu0 0
        %346 = vmatpush1.bf16.msra.mxu0 0
        %347 = vmatprep.subr.bf16.mxu0 0
        %348 = vmatpush1.bf16.msra.mxu0 0
        %349 = vmatprep.subr.bf16.mxu0 0
        %350 = vmatpush1.bf16.msra.mxu0 0
        %351 = vmatprep.subr.bf16.mxu0 0
        %352 = vmatpush1.bf16.msra.mxu0 0
        %353 = vmatprep.subr.bf16.mxu0 0
        %354 = vmatpush1.bf16.msra.mxu0 0
        %355 = vmatprep.subr.bf16.mxu0 0
        %356 = vmatpush1.bf16.msra.mxu0 0
        %357 = vmatprep.subr.bf16.mxu0 0
        %358 = vmatpush1.bf16.msra.mxu0 0
        %359 = vmatprep.subr.bf16.mxu0 0
        %360 = vmatpush1.bf16.msra.mxu0 0
        %361 = vmatprep.subr.bf16.mxu0 0
        %362 = vmatpush1.bf16.msra.mxu0 0
        %363 = vmatprep.subr.bf16.mxu0 0
        %364 = vmatpush1.bf16.msra.mxu0 0
        %365 = vmatprep.subr.bf16.mxu0 0
        %366 = vmatpush1.bf16.msra.mxu0 0
        %367 = vmatprep.subr.bf16.mxu0 0
        %368 = vmatpush1.bf16.msra.mxu0 0
        %369 = vmatprep.subr.bf16.mxu0 0
        %370 = vmatpush1.bf16.msra.mxu0 0
        %371 = vmatprep.subr.bf16.mxu0 0
        %372 = vmatpush1.bf16.msra.mxu0 0
        %373 = vmatprep.mubr.bf16.mxu0 0
        %374 = vmatmul.mubr.bf16.gmra.mrb[0].mxu0 %v336
        %v375 = vpop.f32.mrb[0].mxu0
        %v376 = vadd.f32 %v287, %v375
        %v377 = vpop.f32.mrb[0].mxu0
        %v378 = vadd.f32 %v291, %v377
        %v379 = vpop.f32.mrb[0].mxu0
        %v380 = vadd.f32 %v287, %v379
        %v381 = vpop.f32.mrb[0].mxu0
        %v382 = vadd.f32 %v291, %v381
        %383 = vmatprep.mubr.bf16.mxu0 0
        %384 = vmatmul.mubr.bf16.gmra.mrb[0].mxu0 %v339
        %v385 = vpop.f32.mrb[0].mxu0
        %v386 = vadd.f32 %v287, %v385
        %v387 = vpop.f32.mrb[0].mxu0
        %v388 = vadd.f32 %v291, %v387
        %v389 = vpop.f32.mrb[0].mxu0
        %v390 = vadd.f32 %v287, %v389
        %v391 = vpop.f32.mrb[0].mxu0
        %v392 = vadd.f32 %v291, %v391
        %393 = vdwg.mxu0
        %394 = vmatprep.subr.bf16.mxu0 %v329
        %395 = vmatpush1.bf16.msra.mxu0 %v328
        %396 = vmatprep.subr.bf16.mxu0 0
        %397 = vmatpush1.bf16.msra.mxu0 0
        %398 = vmatprep.subr.bf16.mxu0 0
        %399 = vmatpush1.bf16.msra.mxu0 0
        %400 = vmatprep.subr.bf16.mxu0 0
        %401 = vmatpush1.bf16.msra.mxu0 0
        %402 = vmatprep.subr.bf16.mxu0 0
        %403 = vmatpush1.bf16.msra.mxu0 0
        %404 = vmatprep.subr.bf16.mxu0 0
        %405 = vmatpush1.bf16.msra.mxu0 0
        %406 = vmatprep.subr.bf16.mxu0 0
        %407 = vmatpush1.bf16.msra.mxu0 0
        %408 = vmatprep.subr.bf16.mxu0 0
        %409 = vmatpush1.bf16.msra.mxu0 0
        %410 = vmatprep.subr.bf16.mxu0 0
        %411 = vmatpush1.bf16.msra.mxu0 0
        %412 = vmatprep.subr.bf16.mxu0 0
        %413 = vmatpush1.bf16.msra.mxu0 0
        %414 = vmatprep.subr.bf16.mxu0 0
        %415 = vmatpush1.bf16.msra.mxu0 0
        %416 = vmatprep.subr.bf16.mxu0 0
        %417 = vmatpush1.bf16.msra.mxu0 0
        %418 = vmatprep.subr.bf16.mxu0 0
        %419 = vmatpush1.bf16.msra.mxu0 0
        %420 = vmatprep.subr.bf16.mxu0 0
        %421 = vmatpush1.bf16.msra.mxu0 0
        %422 = vmatprep.subr.bf16.mxu0 0
        %423 = vmatpush1.bf16.msra.mxu0 0
        %424 = vmatprep.subr.bf16.mxu0 0
        %425 = vmatpush1.bf16.msra.mxu0 0
        %426 = vmatprep.mubr.bf16.mxu0 0
        %427 = vmatmul.mubr.bf16.gmra.mrb[0].mxu0 %v336
        %v428 = vpop.f32.mrb[0].mxu0
        %v429 = vadd.f32 %v295, %v428
        %v430 = vpop.f32.mrb[0].mxu0
        %v431 = vadd.f32 %v299, %v430
        %v432 = vpop.f32.mrb[0].mxu0
        %v433 = vadd.f32 %v295, %v432
        %v434 = vpop.f32.mrb[0].mxu0
        %v435 = vadd.f32 %v299, %v434
        %436 = vmatprep.mubr.bf16.mxu0 0
        %437 = vmatmul.mubr.bf16.gmra.mrb[0].mxu0 %v339
        %v438 = vpop.f32.mrb[0].mxu0
        %v439 = vadd.f32 %v295, %v438
        %v440 = vpop.f32.mrb[0].mxu0
        %v441 = vadd.f32 %v299, %v440
        %v442 = vpop.f32.mrb[0].mxu0
        %v443 = vadd.f32 %v295, %v442
        %v444 = vpop.f32.mrb[0].mxu0
        %v445 = vadd.f32 %v299, %v444
        %446 = vdwg.mxu0
        %v447 = vld [vmem:[#allocation4] sm:$0xff]
        %v448 = vld [vmem:[#allocation4 + $0x8] sm:$0xff]
        %v449 = vld [vmem:[#allocation4 + $0x10] sm:$0xff]
        %v450 = vld [vmem:[#allocation4 + $0x18] sm:$0xff]
        %v451 = vld [vmem:[#allocation4 + $0x20] sm:$0xff]
        %v452 = vld [vmem:[#allocation4 + $0x28] sm:$0xff]
        %v453 = vld [vmem:[#allocation4 + $0x30] sm:$0xff]
        %v454 = vld [vmem:[#allocation4 + $0x38] sm:$0xff]
        %v455 = vld [vmem:[#allocation4 + $0x40] sm:$0xff]
        %v456 = vld [vmem:[#allocation4 + $0x48] sm:$0xff]
        %v457 = vld [vmem:[#allocation4 + $0x50] sm:$0xff]
        %v458 = vld [vmem:[#allocation4 + $0x58] sm:$0xff]
        %v459 = vld [vmem:[#allocation4 + $0x60] sm:$0xff]
        %v460 = vld [vmem:[#allocation4 + $0x68] sm:$0xff]
        %v461 = vld [vmem:[#allocation4 + $0x70] sm:$0xff]
        %v462 = vld [vmem:[#allocation4 + $0x78] sm:$0xff]
        %v463 = vld [vmem:[#allocation4 + $0x80] sm:$0xff]
        %v464 = vld [vmem:[#allocation4 + $0x88] sm:$0xff]
        %v465 = vld [vmem:[#allocation4 + $0x90] sm:$0xff]
        %v466 = vld [vmem:[#allocation4 + $0x98] sm:$0xff]
        %v467 = vld [vmem:[#allocation4 + $0xa0] sm:$0xff]
        %v468 = vld [vmem:[#allocation4 + $0xa8] sm:$0xff]
        %v469 = vld [vmem:[#allocation4 + $0xb0] sm:$0xff]
        %v470 = vld [vmem:[#allocation4 + $0xb8] sm:$0xff]
        %v471 = vld [vmem:[#allocation4 + $0xc0] sm:$0xff]
        %v472 = vld [vmem:[#allocation4 + $0xc8] sm:$0xff]
        %v473 = vld [vmem:[#allocation4 + $0xd0] sm:$0xff]
        %v474 = vld [vmem:[#allocation4 + $0xd8] sm:$0xff]
        %v475 = vld [vmem:[#allocation4 + $0xe0] sm:$0xff]
        %v476 = vld [vmem:[#allocation4 + $0xe8] sm:$0xff]
        %v477 = vld [vmem:[#allocation4 + $0xf0] sm:$0xff]
        %v478 = vld [vmem:[#allocation4 + $0xf8] sm:$0xff]
        %v479 = vld [vmem:[#allocation2] sm:$0xff]
        %v480 = vld [vmem:[#allocation3] sm:$0xff]
        %v481 = vpack.c.bf16 %v479, %v479
        %v514 = vunpack.c.l.b16 %v447
        %v515 = vunpack.c.h.b16 %v447
        %v516 = vunpack.c.l.b16 %v448
        %v517 = vunpack.c.h.b16 %v448
        %v518 = vunpack.c.l.b16 %v449
        %v519 = vunpack.c.h.b16 %v449
        %v520 = vunpack.c.l.b16 %v450
        %v521 = vunpack.c.h.b16 %v450
        %v522 = vunpack.c.l.b16 %v451
        %v523 = vunpack.c.h.b16 %v451
        %v524 = vunpack.c.l.b16 %v452
        %v525 = vunpack.c.h.b16 %v452
        %v526 = vunpack.c.l.b16 %v453
        %v527 = vunpack.c.h.b16 %v453
        %v528 = vunpack.c.l.b16 %v454
        %v529 = vunpack.c.h.b16 %v454
        %v530 = vunpack.c.l.b16 %v455
        %v531 = vunpack.c.h.b16 %v455
        %v532 = vunpack.c.l.b16 %v456
        %v533 = vunpack.c.h.b16 %v456
        %v534 = vunpack.c.l.b16 %v457
        %v535 = vunpack.c.h.b16 %v457
        %v536 = vunpack.c.l.b16 %v458
        %v537 = vunpack.c.h.b16 %v458
        %v538 = vunpack.c.l.b16 %v459
        %v539 = vunpack.c.h.b16 %v459
        %v540 = vunpack.c.l.b16 %v460
        %v541 = vunpack.c.h.b16 %v460
        %v542 = vunpack.c.l.b16 %v461
        %v543 = vunpack.c.h.b16 %v461
        %v544 = vunpack.c.l.b16 %v462
        %v545 = vunpack.c.h.b16 %v462
        %v546 = vunpack.c.l.b16 %v463
        %v547 = vunpack.c.h.b16 %v463
        %v548 = vunpack.c.l.b16 %v464
        %v549 = vunpack.c.h.b16 %v464
        %v550 = vunpack.c.l.b16 %v465
        %v551 = vunpack.c.h.b16 %v465
        %v552 = vunpack.c.l.b16 %v466
        %v553 = vunpack.c.h.b16 %v466
        %v554 = vunpack.c.l.b16 %v467
        %v555 = vunpack.c.h.b16 %v467
        %v556 = vunpack.c.l.b16 %v468
        %v557 = vunpack.c.h.b16 %v468
        %v558 = vunpack.c.l.b16 %v469
        %v559 = vunpack.c.h.b16 %v469
        %v560 = vunpack.c.l.b16 %v470
        %v561 = vunpack.c.h.b16 %v470
        %v562 = vunpack.c.l.b16 %v471
        %v563 = vunpack.c.h.b16 %v471
        %v564 = vunpack.c.l.b16 %v472
        %v565 = vunpack.c.h.b16 %v472
        %v566 = vunpack.c.l.b16 %v473
        %v567 = vunpack.c.h.b16 %v473
        %v568 = vunpack.c.l.b16 %v474
        %v569 = vunpack.c.h.b16 %v474
        %v570 = vunpack.c.l.b16 %v475
        %v571 = vunpack.c.h.b16 %v475
        %v572 = vunpack.c.l.b16 %v476
        %v573 = vunpack.c.h.b16 %v476
        %v574 = vunpack.c.l.b16 %v477
        %v575 = vunpack.c.h.b16 %v477
        %v576 = vunpack.c.l.b16 %v478
        %v577 = vunpack.c.h.b16 %v478
        %v578 = vpack.c.b16 %v518, %v514
        %v579 = vpack.c.b16 %v519, %v515
        %v580 = vpack.c.b16 %v520, %v516
        %v581 = vpack.c.b16 %v521, %v517
        %v582 = vpack.c.b16 %v526, %v522
        %v583 = vpack.c.b16 %v527, %v523
        %v584 = vpack.c.b16 %v528, %v524
        %v585 = vpack.c.b16 %v529, %v525
        %v586 = vpack.c.b16 %v534, %v530
        %v587 = vpack.c.b16 %v535, %v531
        %v588 = vpack.c.b16 %v536, %v532
        %v589 = vpack.c.b16 %v537, %v533
        %v590 = vpack.c.b16 %v542, %v538
        %v591 = vpack.c.b16 %v543, %v539
        %v592 = vpack.c.b16 %v544, %v540
        %v593 = vpack.c.b16 %v545, %v541
        %v594 = vpack.c.b16 %v550, %v546
        %v595 = vpack.c.b16 %v551, %v547
        %v596 = vpack.c.b16 %v552, %v548
        %v597 = vpack.c.b16 %v553, %v549
        %v598 = vpack.c.b16 %v558, %v554
        %v599 = vpack.c.b16 %v559, %v555
        %v600 = vpack.c.b16 %v560, %v556
        %v601 = vpack.c.b16 %v561, %v557
        %v602 = vpack.c.b16 %v566, %v562
        %v603 = vpack.c.b16 %v567, %v563
        %v604 = vpack.c.b16 %v568, %v564
        %v605 = vpack.c.b16 %v569, %v565
        %v606 = vpack.c.b16 %v574, %v570
        %v607 = vpack.c.b16 %v575, %v571
        %v608 = vpack.c.b16 %v576, %v572
        %v609 = vpack.c.b16 %v577, %v573
        %642 = vmatprep.subr.bf16.mxu0 %v579
        %643 = vmatpush1.bf16.msra.mxu0 %v578
        %644 = vmatprep.subr.bf16.mxu0 %v583
        %645 = vmatpush1.bf16.msra.mxu0 %v582
        %646 = vmatprep.subr.bf16.mxu0 %v587
        %647 = vmatpush1.bf16.msra.mxu0 %v586
        %648 = vmatprep.subr.bf16.mxu0 %v591
        %649 = vmatpush1.bf16.msra.mxu0 %v590
        %650 = vmatprep.subr.bf16.mxu0 %v595
        %651 = vmatpush1.bf16.msra.mxu0 %v594
        %652 = vmatprep.subr.bf16.mxu0 %v599
        %653 = vmatpush1.bf16.msra.mxu0 %v598
        %654 = vmatprep.subr.bf16.mxu0 %v603
        %655 = vmatpush1.bf16.msra.mxu0 %v602
        %656 = vmatprep.subr.bf16.mxu0 %v607
        %657 = vmatpush1.bf16.msra.mxu0 %v606
        %658 = vmatprep.subr.bf16.mxu0 0
        %659 = vmatpush1.bf16.msra.mxu0 0
        %660 = vmatprep.subr.bf16.mxu0 0
        %661 = vmatpush1.bf16.msra.mxu0 0
        %662 = vmatprep.subr.bf16.mxu0 0
        %663 = vmatpush1.bf16.msra.mxu0 0
        %664 = vmatprep.subr.bf16.mxu0 0
        %665 = vmatpush1.bf16.msra.mxu0 0
        %666 = vmatprep.subr.bf16.mxu0 0
        %667 = vmatpush1.bf16.msra.mxu0 0
        %668 = vmatprep.subr.bf16.mxu0 0
        %669 = vmatpush1.bf16.msra.mxu0 0
        %670 = vmatprep.subr.bf16.mxu0 0
        %671 = vmatpush1.bf16.msra.mxu0 0
        %672 = vmatprep.subr.bf16.mxu0 0
        %673 = vmatpush1.bf16.msra.mxu0 0
        %674 = vmatprep.mubr.bf16.mxu0 0
        %675 = vmatmul.mubr.bf16.gmra.mrb[0].mxu0 %v481
        %v676 = vpop.f32.mrb[0].mxu0
        %v677 = vadd.f32 0.0, %v676
        %v678 = vpop.f32.mrb[0].mxu0
        %v679 = vadd.f32 0.0, %v678
        %v680 = vpop.f32.mrb[0].mxu0
        %v681 = vpop.f32.mrb[0].mxu0
        %682 = vdwg.mxu0
        %683 = vmatprep.subr.bf16.mxu0 %v581
        %684 = vmatpush1.bf16.msra.mxu0 %v580
        %685 = vmatprep.subr.bf16.mxu0 %v585
        %686 = vmatpush1.bf16.msra.mxu0 %v584
        %687 = vmatprep.subr.bf16.mxu0 %v589
        %688 = vmatpush1.bf16.msra.mxu0 %v588
        %689 = vmatprep.subr.bf16.mxu0 %v593
        %690 = vmatpush1.bf16.msra.mxu0 %v592
        %691 = vmatprep.subr.bf16.mxu0 %v597
        %692 = vmatpush1.bf16.msra.mxu0 %v596
        %693 = vmatprep.subr.bf16.mxu0 %v601
        %694 = vmatpush1.bf16.msra.mxu0 %v600
        %695 = vmatprep.subr.bf16.mxu0 %v605
        %696 = vmatpush1.bf16.msra.mxu0 %v604
        %697 = vmatprep.subr.bf16.mxu0 %v609
        %698 = vmatpush1.bf16.msra.mxu0 %v608
        %699 = vmatprep.subr.bf16.mxu0 0
        %700 = vmatpush1.bf16.msra.mxu0 0
        %701 = vmatprep.subr.bf16.mxu0 0
        %702 = vmatpush1.bf16.msra.mxu0 0
        %703 = vmatprep.subr.bf16.mxu0 0
        %704 = vmatpush1.bf16.msra.mxu0 0
        %705 = vmatprep.subr.bf16.mxu0 0
        %706 = vmatpush1.bf16.msra.mxu0 0
        %707 = vmatprep.subr.bf16.mxu0 0
        %708 = vmatpush1.bf16.msra.mxu0 0
        %709 = vmatprep.subr.bf16.mxu0 0
        %710 = vmatpush1.bf16.msra.mxu0 0
        %711 = vmatprep.subr.bf16.mxu0 0
        %712 = vmatpush1.bf16.msra.mxu0 0
        %713 = vmatprep.subr.bf16.mxu0 0
        %714 = vmatpush1.bf16.msra.mxu0 0
        %715 = vmatprep.mubr.bf16.mxu0 0
        %716 = vmatmul.mubr.bf16.gmra.mrb[0].mxu0 %v481
        %v717 = vpop.f32.mrb[0].mxu0
        %v718 = vadd.f32 0.0, %v717
        %v719 = vpop.f32.mrb[0].mxu0
        %v720 = vadd.f32 0.0, %v719
        %v721 = vpop.f32.mrb[0].mxu0
        %v722 = vpop.f32.mrb[0].mxu0
        %723 = vdwg.mxu0
        %v724 = vadd.f32 %v376, %v677
        %v725 = vadd.f32 %v378, %v679
        %v726 = vadd.f32 %v429, %v718
        %v727 = vadd.f32 %v431, %v720
        %v728 = vxor.u32 %v724, 2147483648
        %v729 = vmul.f32 %v728, 1.442695
        %v730 = vpow.pop %v729
        %v731 = vadd.f32 %v730, 1.0
        %v732 = vrcp.pop %v731
        %v733 = vmul.f32 1.0, %v732
        %v734 = vxor.u32 %v725, 2147483648
        %v735 = vmul.f32 %v734, 1.442695
        %v736 = vpow.pop %v735
        %v737 = vadd.f32 %v736, 1.0
        %v738 = vrcp.pop %v737
        %v739 = vmul.f32 1.0, %v738
        %v740 = vtanh.pop %v726
        %v741 = vxor.u32 %v727, 2147483648
        %v742 = vmul.f32 %v741, 1.442695
        %v743 = vpow.pop %v742
        %v744 = vadd.f32 %v743, 1.0
        %v745 = vrcp.pop %v744
        %v746 = vmul.f32 1.0, %v745
        %v747 = vmul.f32 %v739, %v480
        %v748 = vmul.f32 %v733, %v740
        %v749 = vadd.f32 %v747, %v748
        %v750 = vtanh.pop %v749
        %v751 = vmul.f32 %v746, %v750
        %v752 = vpack.c.bf16 %v751, %v751
        %753 = vmatprep.subr.bf16.mxu0 %v579
        %754 = vmatpush1.bf16.msra.mxu0 %v578
        %755 = vmatprep.subr.bf16.mxu0 %v583
        %756 = vmatpush1.bf16.msra.mxu0 %v582
        %757 = vmatprep.subr.bf16.mxu0 %v587
        %758 = vmatpush1.bf16.msra.mxu0 %v586
        %759 = vmatprep.subr.bf16.mxu0 %v591
        %760 = vmatpush1.bf16.msra.mxu0 %v590
        %761 = vmatprep.subr.bf16.mxu0 %v595
        %762 = vmatpush1.bf16.msra.mxu0 %v594
        %763 = vmatprep.subr.bf16.mxu0 %v599
        %764 = vmatpush1.bf16.msra.mxu0 %v598
        %765 = vmatprep.subr.bf16.mxu0 %v603
        %766 = vmatpush1.bf16.msra.mxu0 %v602
        %767 = vmatprep.subr.bf16.mxu0 %v607
        %768 = vmatpush1.bf16.msra.mxu0 %v606
        %769 = vmatprep.subr.bf16.mxu0 0
        %770 = vmatpush1.bf16.msra.mxu0 0
        %771 = vmatprep.subr.bf16.mxu0 0
        %772 = vmatpush1.bf16.msra.mxu0 0
        %773 = vmatprep.subr.bf16.mxu0 0
        %774 = vmatpush1.bf16.msra.mxu0 0
        %775 = vmatprep.subr.bf16.mxu0 0
        %776 = vmatpush1.bf16.msra.mxu0 0
        %777 = vmatprep.subr.bf16.mxu0 0
        %778 = vmatpush1.bf16.msra.mxu0 0
        %779 = vmatprep.subr.bf16.mxu0 0
        %780 = vmatpush1.bf16.msra.mxu0 0
        %781 = vmatprep.subr.bf16.mxu0 0
        %782 = vmatpush1.bf16.msra.mxu0 0
        %783 = vmatprep.subr.bf16.mxu0 0
        %784 = vmatpush1.bf16.msra.mxu0 0
        %785 = vmatprep.mubr.bf16.mxu0 0
        %786 = vmatmul.mubr.bf16.gmra.mrb[0].mxu0 %v752
        %v787 = vpop.f32.mrb[0].mxu0
        %v788 = vadd.f32 0.0, %v787
        %v789 = vpop.f32.mrb[0].mxu0
        %v790 = vadd.f32 0.0, %v789
        %v791 = vpop.f32.mrb[0].mxu0
        %v792 = vpop.f32.mrb[0].mxu0
        %793 = vdwg.mxu0
        %794 = vmatprep.subr.bf16.mxu0 %v581
        %795 = vmatpush1.bf16.msra.mxu0 %v580
        %796 = vmatprep.subr.bf16.mxu0 %v585
        %797 = vmatpush1.bf16.msra.mxu0 %v584
        %798 = vmatprep.subr.bf16.mxu0 %v589
        %799 = vmatpush1.bf16.msra.mxu0 %v588
        %800 = vmatprep.subr.bf16.mxu0 %v593
        %801 = vmatpush1.bf16.msra.mxu0 %v592
        %802 = vmatprep.subr.bf16.mxu0 %v597
        %803 = vmatpush1.bf16.msra.mxu0 %v596
        %804 = vmatprep.subr.bf16.mxu0 %v601
        %805 = vmatpush1.bf16.msra.mxu0 %v600
        %806 = vmatprep.subr.bf16.mxu0 %v605
        %807 = vmatpush1.bf16.msra.mxu0 %v604
        %808 = vmatprep.subr.bf16.mxu0 %v609
        %809 = vmatpush1.bf16.msra.mxu0 %v608
        %810 = vmatprep.subr.bf16.mxu0 0
        %811 = vmatpush1.bf16.msra.mxu0 0
        %812 = vmatprep.subr.bf16.mxu0 0
        %813 = vmatpush1.bf16.msra.mxu0 0
        %814 = vmatprep.subr.bf16.mxu0 0
        %815 = vmatpush1.bf16.msra.mxu0 0
        %816 = vmatprep.subr.bf16.mxu0 0
        %817 = vmatpush1.bf16.msra.mxu0 0
        %818 = vmatprep.subr.bf16.mxu0 0
        %819 = vmatpush1.bf16.msra.mxu0 0
        %820 = vmatprep.subr.bf16.mxu0 0
        %821 = vmatpush1.bf16.msra.mxu0 0
        %822 = vmatprep.subr.bf16.mxu0 0
        %823 = vmatpush1.bf16.msra.mxu0 0
        %824 = vmatprep.subr.bf16.mxu0 0
        %825 = vmatpush1.bf16.msra.mxu0 0
        %826 = vmatprep.mubr.bf16.mxu0 0
        %827 = vmatmul.mubr.bf16.gmra.mrb[0].mxu0 %v752
        %v828 = vpop.f32.mrb[0].mxu0
        %v829 = vadd.f32 0.0, %v828
        %v830 = vpop.f32.mrb[0].mxu0
        %v831 = vadd.f32 0.0, %v830
        %v832 = vpop.f32.mrb[0].mxu0
        %v833 = vpop.f32.mrb[0].mxu0
        %834 = vdwg.mxu0
        %v835 = vadd.f32 %v380, %v788
        %v836 = vadd.f32 %v382, %v790
        %v837 = vadd.f32 %v433, %v829
        %v838 = vadd.f32 %v435, %v831
        %v839 = vxor.u32 %v835, 2147483648
        %v840 = vmul.f32 %v839, 1.442695
        %v841 = vpow.pop %v840
        %v842 = vadd.f32 %v841, 1.0
        %v843 = vrcp.pop %v842
        %v844 = vmul.f32 1.0, %v843
        %v845 = vxor.u32 %v836, 2147483648
        %v846 = vmul.f32 %v845, 1.442695
        %v847 = vpow.pop %v846
        %v848 = vadd.f32 %v847, 1.0
        %v849 = vrcp.pop %v848
        %v850 = vmul.f32 1.0, %v849
        %v851 = vtanh.pop %v837
        %v852 = vxor.u32 %v838, 2147483648
        %v853 = vmul.f32 %v852, 1.442695
        %v854 = vpow.pop %v853
        %v855 = vadd.f32 %v854, 1.0
        %v856 = vrcp.pop %v855
        %v857 = vmul.f32 1.0, %v856
        %v858 = vmul.f32 %v850, %v749
        %v859 = vmul.f32 %v844, %v851
        %v860 = vadd.f32 %v858, %v859
        %v861 = vtanh.pop %v860
        %v862 = vmul.f32 %v857, %v861
        %v863 = vpack.c.bf16 %v862, %v862
        %864 = vmatprep.subr.bf16.mxu0 %v579
        %865 = vmatpush1.bf16.msra.mxu0 %v578
        %866 = vmatprep.subr.bf16.mxu0 %v583
        %867 = vmatpush1.bf16.msra.mxu0 %v582
        %868 = vmatprep.subr.bf16.mxu0 %v587
        %869 = vmatpush1.bf16.msra.mxu0 %v586
        %870 = vmatprep.subr.bf16.mxu0 %v591
        %871 = vmatpush1.bf16.msra.mxu0 %v590
        %872 = vmatprep.subr.bf16.mxu0 %v595
        %873 = vmatpush1.bf16.msra.mxu0 %v594
        %874 = vmatprep.subr.bf16.mxu0 %v599
        %875 = vmatpush1.bf16.msra.mxu0 %v598
        %876 = vmatprep.subr.bf16.mxu0 %v603
        %877 = vmatpush1.bf16.msra.mxu0 %v602
        %878 = vmatprep.subr.bf16.mxu0 %v607
        %879 = vmatpush1.bf16.msra.mxu0 %v606
        %880 = vmatprep.subr.bf16.mxu0 0
        %881 = vmatpush1.bf16.msra.mxu0 0
        %882 = vmatprep.subr.bf16.mxu0 0
        %883 = vmatpush1.bf16.msra.mxu0 0
        %884 = vmatprep.subr.bf16.mxu0 0
        %885 = vmatpush1.bf16.msra.mxu0 0
        %886 = vmatprep.subr.bf16.mxu0 0
        %887 = vmatpush1.bf16.msra.mxu0 0
        %888 = vmatprep.subr.bf16.mxu0 0
        %889 = vmatpush1.bf16.msra.mxu0 0
        %890 = vmatprep.subr.bf16.mxu0 0
        %891 = vmatpush1.bf16.msra.mxu0 0
        %892 = vmatprep.subr.bf16.mxu0 0
        %893 = vmatpush1.bf16.msra.mxu0 0
        %894 = vmatprep.subr.bf16.mxu0 0
        %895 = vmatpush1.bf16.msra.mxu0 0
        %896 = vmatprep.mubr.bf16.mxu0 0
        %897 = vmatmul.mubr.bf16.gmra.mrb[0].mxu0 %v863
        %v898 = vpop.f32.mrb[0].mxu0
        %v899 = vadd.f32 0.0, %v898
        %v900 = vpop.f32.mrb[0].mxu0
        %v901 = vadd.f32 0.0, %v900
        %v902 = vpop.f32.mrb[0].mxu0
        %v903 = vpop.f32.mrb[0].mxu0
        %904 = vdwg.mxu0
        %905 = vmatprep.subr.bf16.mxu0 %v581
        %906 = vmatpush1.bf16.msra.mxu0 %v580
        %907 = vmatprep.subr.bf16.mxu0 %v585
        %908 = vmatpush1.bf16.msra.mxu0 %v584
        %909 = vmatprep.subr.bf16.mxu0 %v589
        %910 = vmatpush1.bf16.msra.mxu0 %v588
        %911 = vmatprep.subr.bf16.mxu0 %v593
        %912 = vmatpush1.bf16.msra.mxu0 %v592
        %913 = vmatprep.subr.bf16.mxu0 %v597
        %914 = vmatpush1.bf16.msra.mxu0 %v596
        %915 = vmatprep.subr.bf16.mxu0 %v601
        %916 = vmatpush1.bf16.msra.mxu0 %v600
        %917 = vmatprep.subr.bf16.mxu0 %v605
        %918 = vmatpush1.bf16.msra.mxu0 %v604
        %919 = vmatprep.subr.bf16.mxu0 %v609
        %920 = vmatpush1.bf16.msra.mxu0 %v608
        %921 = vmatprep.subr.bf16.mxu0 0
        %922 = vmatpush1.bf16.msra.mxu0 0
        %923 = vmatprep.subr.bf16.mxu0 0
        %924 = vmatpush1.bf16.msra.mxu0 0
        %925 = vmatprep.subr.bf16.mxu0 0
        %926 = vmatpush1.bf16.msra.mxu0 0
        %927 = vmatprep.subr.bf16.mxu0 0
        %928 = vmatpush1.bf16.msra.mxu0 0
        %929 = vmatprep.subr.bf16.mxu0 0
        %930 = vmatpush1.bf16.msra.mxu0 0
        %931 = vmatprep.subr.bf16.mxu0 0
        %932 = vmatpush1.bf16.msra.mxu0 0
        %933 = vmatprep.subr.bf16.mxu0 0
        %934 = vmatpush1.bf16.msra.mxu0 0
        %935 = vmatprep.subr.bf16.mxu0 0
        %936 = vmatpush1.bf16.msra.mxu0 0
        %937 = vmatprep.mubr.bf16.mxu0 0
        %938 = vmatmul.mubr.bf16.gmra.mrb[0].mxu0 %v863
        %v939 = vpop.f32.mrb[0].mxu0
        %v940 = vadd.f32 0.0, %v939
        %v941 = vpop.f32.mrb[0].mxu0
        %v942 = vadd.f32 0.0, %v941
        %v943 = vpop.f32.mrb[0].mxu0
        %v944 = vpop.f32.mrb[0].mxu0
        %945 = vdwg.mxu0
        %v946 = vadd.f32 %v386, %v899
        %v947 = vadd.f32 %v388, %v901
        %v948 = vadd.f32 %v439, %v940
        %v949 = vadd.f32 %v441, %v942
        %v950 = vxor.u32 %v946, 2147483648
        %v951 = vmul.f32 %v950, 1.442695
        %v952 = vpow.pop %v951
        %v953 = vadd.f32 %v952, 1.0
        %v954 = vrcp.pop %v953
        %v955 = vmul.f32 1.0, %v954
        %v956 = vxor.u32 %v947, 2147483648
        %v957 = vmul.f32 %v956, 1.442695
        %v958 = vpow.pop %v957
        %v959 = vadd.f32 %v958, 1.0
        %v960 = vrcp.pop %v959
        %v961 = vmul.f32 1.0, %v960
        %v962 = vtanh.pop %v948
        %v963 = vxor.u32 %v949, 2147483648
        %v964 = vmul.f32 %v963, 1.442695
        %v965 = vpow.pop %v964
        %v966 = vadd.f32 %v965, 1.0
        %v967 = vrcp.pop %v966
        %v968 = vmul.f32 1.0, %v967
        %v969 = vmul.f32 %v961, %v860
        %v970 = vmul.f32 %v955, %v962
        %v971 = vadd.f32 %v969, %v970
        %v972 = vtanh.pop %v971
        %v973 = vmul.f32 %v968, %v972
        %v974 = vpack.c.bf16 %v973, %v973
        %975 = vmatprep.subr.bf16.mxu0 %v579
        %976 = vmatpush1.bf16.msra.mxu0 %v578
        %977 = vmatprep.subr.bf16.mxu0 %v583
        %978 = vmatpush1.bf16.msra.mxu0 %v582
        %979 = vmatprep.subr.bf16.mxu0 %v587
        %980 = vmatpush1.bf16.msra.mxu0 %v586
        %981 = vmatprep.subr.bf16.mxu0 %v591
        %982 = vmatpush1.bf16.msra.mxu0 %v590
        %983 = vmatprep.subr.bf16.mxu0 %v595
        %984 = vmatpush1.bf16.msra.mxu0 %v594
        %985 = vmatprep.subr.bf16.mxu0 %v599
        %986 = vmatpush1.bf16.msra.mxu0 %v598
        %987 = vmatprep.subr.bf16.mxu0 %v603
        %988 = vmatpush1.bf16.msra.mxu0 %v602
        %989 = vmatprep.subr.bf16.mxu0 %v607
        %990 = vmatpush1.bf16.msra.mxu0 %v606
        %991 = vmatprep.subr.bf16.mxu0 0
        %992 = vmatpush1.bf16.msra.mxu0 0
        %993 = vmatprep.subr.bf16.mxu0 0
        %994 = vmatpush1.bf16.msra.mxu0 0
        %995 = vmatprep.subr.bf16.mxu0 0
        %996 = vmatpush1.bf16.msra.mxu0 0
        %997 = vmatprep.subr.bf16.mxu0 0
        %998 = vmatpush1.bf16.msra.mxu0 0
        %999 = vmatprep.subr.bf16.mxu0 0
        %1000 = vmatpush1.bf16.msra.mxu0 0
        %1001 = vmatprep.subr.bf16.mxu0 0
        %1002 = vmatpush1.bf16.msra.mxu0 0
        %1003 = vmatprep.subr.bf16.mxu0 0
        %1004 = vmatpush1.bf16.msra.mxu0 0
        %1005 = vmatprep.subr.bf16.mxu0 0
        %1006 = vmatpush1.bf16.msra.mxu0 0
        %1007 = vmatprep.mubr.bf16.mxu0 0
        %1008 = vmatmul.mubr.bf16.gmra.mrb[0].mxu0 %v974
        %v1009 = vpop.f32.mrb[0].mxu0
        %v1010 = vadd.f32 0.0, %v1009
        %v1011 = vpop.f32.mrb[0].mxu0
        %v1012 = vadd.f32 0.0, %v1011
        %v1013 = vpop.f32.mrb[0].mxu0
        %v1014 = vpop.f32.mrb[0].mxu0
        %1015 = vdwg.mxu0
        %1016 = vmatprep.subr.bf16.mxu0 %v581
        %1017 = vmatpush1.bf16.msra.mxu0 %v580
        %1018 = vmatprep.subr.bf16.mxu0 %v585
        %1019 = vmatpush1.bf16.msra.mxu0 %v584
        %1020 = vmatprep.subr.bf16.mxu0 %v589
        %1021 = vmatpush1.bf16.msra.mxu0 %v588
        %1022 = vmatprep.subr.bf16.mxu0 %v593
        %1023 = vmatpush1.bf16.msra.mxu0 %v592
        %1024 = vmatprep.subr.bf16.mxu0 %v597
        %1025 = vmatpush1.bf16.msra.mxu0 %v596
        %1026 = vmatprep.subr.bf16.mxu0 %v601
        %1027 = vmatpush1.bf16.msra.mxu0 %v600
        %1028 = vmatprep.subr.bf16.mxu0 %v605
        %1029 = vmatpush1.bf16.msra.mxu0 %v604
        %1030 = vmatprep.subr.bf16.mxu0 %v609
        %1031 = vmatpush1.bf16.msra.mxu0 %v608
        %1032 = vmatprep.subr.bf16.mxu0 0
        %1033 = vmatpush1.bf16.msra.mxu0 0
        %1034 = vmatprep.subr.bf16.mxu0 0
        %1035 = vmatpush1.bf16.msra.mxu0 0
        %1036 = vmatprep.subr.bf16.mxu0 0
        %1037 = vmatpush1.bf16.msra.mxu0 0
        %1038 = vmatprep.subr.bf16.mxu0 0
        %1039 = vmatpush1.bf16.msra.mxu0 0
        %1040 = vmatprep.subr.bf16.mxu0 0
        %1041 = vmatpush1.bf16.msra.mxu0 0
        %1042 = vmatprep.subr.bf16.mxu0 0
        %1043 = vmatpush1.bf16.msra.mxu0 0
        %1044 = vmatprep.subr.bf16.mxu0 0
        %1045 = vmatpush1.bf16.msra.mxu0 0
        %1046 = vmatprep.subr.bf16.mxu0 0
        %1047 = vmatpush1.bf16.msra.mxu0 0
        %1048 = vmatprep.mubr.bf16.mxu0 0
        %1049 = vmatmul.mubr.bf16.gmra.mrb[0].mxu0 %v974
        %v1050 = vpop.f32.mrb[0].mxu0
        %v1051 = vadd.f32 0.0, %v1050
        %v1052 = vpop.f32.mrb[0].mxu0
        %v1053 = vadd.f32 0.0, %v1052
        %v1054 = vpop.f32.mrb[0].mxu0
        %v1055 = vpop.f32.mrb[0].mxu0
        %1056 = vdwg.mxu0
        %v1057 = vadd.f32 %v390, %v1010
        %v1058 = vadd.f32 %v392, %v1012
        %v1059 = vadd.f32 %v443, %v1051
        %v1060 = vadd.f32 %v445, %v1053
        %v1061 = vxor.u32 %v1057, 2147483648
        %v1062 = vmul.f32 %v1061, 1.442695
        %v1063 = vpow.pop %v1062
        %v1064 = vadd.f32 %v1063, 1.0
        %v1065 = vrcp.pop %v1064
        %v1066 = vmul.f32 1.0, %v1065
        %v1067 = vxor.u32 %v1058, 2147483648
        %v1068 = vmul.f32 %v1067, 1.442695
        %v1069 = vpow.pop %v1068
        %v1070 = vadd.f32 %v1069, 1.0
        %v1071 = vrcp.pop %v1070
        %v1072 = vmul.f32 1.0, %v1071
        %v1073 = vtanh.pop %v1059
        %v1074 = vxor.u32 %v1060, 2147483648
        %v1075 = vmul.f32 %v1074, 1.442695
        %v1076 = vpow.pop %v1075
        %v1077 = vadd.f32 %v1076, 1.0
        %v1078 = vrcp.pop %v1077
        %v1079 = vmul.f32 1.0, %v1078
        %v1080 = vmul.f32 %v1072, %v971
        %v1081 = vmul.f32 %v1066, %v1073
        %v1082 = vadd.f32 %v1080, %v1081
        %v1083 = vtanh.pop %v1082
        %v1084 = vmul.f32 %v1079, %v1083
        %1085 = vst [vmem:[#allocation2] sm:$0xff] %v1084
        %1086 = vst [vmem:[#allocation3] sm:$0xff] %v1082
        %p1087 = scmp.eq.s32.totalorder %s19, 1
        // Predicated region
        $region57: #{lstm_net_forward.1} parent=43 // pred_check
          %p1088 = pneg %p1087
        $region58: #{lstm_net_forward.1} parent=43 // pred_check_branch
          %1090 = sbr.rel (%p1088) target = $region60
        $region59: #{lstm_net_forward.1} parent=43 // pred_region
          %v1091 = vpack.c.bf16 %v1084, %v1084
          %v1092 = vld [vmem:[%s4] sm:$0xf]
          %v1093 = vld [vmem:[%s4 + $0x4] sm:$0xf]
          %v1094 = vld [vmem:[%s4 + $0x8] sm:$0xf]
          %v1095 = vld [vmem:[%s4 + $0xc] sm:$0xf]
          %v1096 = vld [vmem:[%s4 + $0x10] sm:$0xf]
          %v1097 = vld [vmem:[%s4 + $0x14] sm:$0xf]
          %v1098 = vld [vmem:[%s4 + $0x18] sm:$0xf]
          %v1099 = vld [vmem:[%s4 + $0x1c] sm:$0xf]
          %v1100 = vld [vmem:[%s4 + $0x20] sm:$0xf]
          %v1101 = vld [vmem:[%s4 + $0x24] sm:$0xf]
          %v1102 = vld [vmem:[%s4 + $0x28] sm:$0xf]
          %v1103 = vld [vmem:[%s4 + $0x2c] sm:$0xf]
          %v1104 = vld [vmem:[%s4 + $0x30] sm:$0xf]
          %v1105 = vld [vmem:[%s4 + $0x34] sm:$0xf]
          %v1106 = vld [vmem:[%s4 + $0x38] sm:$0xf]
          %v1107 = vld [vmem:[%s4 + $0x3c] sm:$0xf]
          %v1108 = vld [vmem:[%s5] sm:$0x1]
          %v1110 = vlaneseq
          %v1111 = vshrl.u32 %v1110, 7
          %v1112 = vsub.s32 0, %v1111
          %v1113 = vrot.slane %v1108, %v1112
          %v1131 = vunpack.c.l.b16 %v1092
          %v1132 = vunpack.c.l.b16 %v1093
          %v1133 = vunpack.c.l.b16 %v1094
          %v1134 = vunpack.c.l.b16 %v1095
          %v1135 = vunpack.c.l.b16 %v1096
          %v1136 = vunpack.c.l.b16 %v1097
          %v1137 = vunpack.c.l.b16 %v1098
          %v1138 = vunpack.c.l.b16 %v1099
          %v1139 = vunpack.c.l.b16 %v1100
          %v1140 = vunpack.c.l.b16 %v1101
          %v1141 = vunpack.c.l.b16 %v1102
          %v1142 = vunpack.c.l.b16 %v1103
          %v1143 = vunpack.c.l.b16 %v1104
          %v1144 = vunpack.c.l.b16 %v1105
          %v1145 = vunpack.c.l.b16 %v1106
          %v1146 = vunpack.c.l.b16 %v1107
          %v1147 = vpack.c.b16 %v1132, %v1131
          %v1148 = vpack.c.b16 %v1134, %v1133
          %v1149 = vpack.c.b16 %v1136, %v1135
          %v1150 = vpack.c.b16 %v1138, %v1137
          %v1151 = vpack.c.b16 %v1140, %v1139
          %v1152 = vpack.c.b16 %v1142, %v1141
          %v1153 = vpack.c.b16 %v1144, %v1143
          %v1154 = vpack.c.b16 %v1146, %v1145
          %1163 = vmatprep.subr.bf16.mxu0 0
          %1164 = vmatpush1.bf16.msra.mxu0 %v1147
          %1165 = vmatprep.subr.bf16.mxu0 0
          %1166 = vmatpush1.bf16.msra.mxu0 %v1148
          %1167 = vmatprep.subr.bf16.mxu0 0
          %1168 = vmatpush1.bf16.msra.mxu0 %v1149
          %1169 = vmatprep.subr.bf16.mxu0 0
          %1170 = vmatpush1.bf16.msra.mxu0 %v1150
          %1171 = vmatprep.subr.bf16.mxu0 0
          %1172 = vmatpush1.bf16.msra.mxu0 %v1151
          %1173 = vmatprep.subr.bf16.mxu0 0
          %1174 = vmatpush1.bf16.msra.mxu0 %v1152
          %1175 = vmatprep.subr.bf16.mxu0 0
          %1176 = vmatpush1.bf16.msra.mxu0 %v1153
          %1177 = vmatprep.subr.bf16.mxu0 0
          %1178 = vmatpush1.bf16.msra.mxu0 %v1154
          %1179 = vmatprep.subr.bf16.mxu0 0
          %1180 = vmatpush1.bf16.msra.mxu0 0
          %1181 = vmatprep.subr.bf16.mxu0 0
          %1182 = vmatpush1.bf16.msra.mxu0 0
          %1183 = vmatprep.subr.bf16.mxu0 0
          %1184 = vmatpush1.bf16.msra.mxu0 0
          %1185 = vmatprep.subr.bf16.mxu0 0
          %1186 = vmatpush1.bf16.msra.mxu0 0
          %1187 = vmatprep.subr.bf16.mxu0 0
          %1188 = vmatpush1.bf16.msra.mxu0 0
          %1189 = vmatprep.subr.bf16.mxu0 0
          %1190 = vmatpush1.bf16.msra.mxu0 0
          %1191 = vmatprep.subr.bf16.mxu0 0
          %1192 = vmatpush1.bf16.msra.mxu0 0
          %1193 = vmatprep.subr.bf16.mxu0 0
          %1194 = vmatpush1.bf16.msra.mxu0 0
          %1195 = vmatprep.mubr.bf16.mxu0 0
          %1196 = vmatmul.mubr.bf16.gmra.mrb[0].mxu0 %v1091
          %v1197 = vpop.f32.mrb[0].mxu0
          %v1198 = vadd.f32 %v1113, %v1197
          %v1199 = vpop.f32.mrb[0].mxu0
          %v1200 = vpop.f32.mrb[0].mxu0
          %v1201 = vpop.f32.mrb[0].mxu0
          %1202 = vdwg.mxu0
          %1203 = vst [vmem:[%s6] sm:$0xff] %v1198
        $region60: #{lstm_net_forward.1} parent=43 // pred_fallthru
          _
        // Predicated region
        $region61: #{lstm_net_forward.1} parent=43 // pred_check
          %p1204 = pneg %p163
        $region62: #{lstm_net_forward.1} parent=43 // pred_check_branch
          %1206 = sbr.rel (%p1204) target = $region64
        $region63: #{lstm_net_forward.1} parent=43 // pred_region
          _
        $region64: #{lstm_net_forward.1} parent=43 // pred_fallthru
          _
        // Predicated region
        $region65: #{lstm_net_forward.1} parent=43 // pred_check
          %p1207 = pneg %p163
        $region66: #{lstm_net_forward.1} parent=43 // pred_check_branch
          %1209 = sbr.rel (%p1207) target = $region68
        $region67: #{lstm_net_forward.1} parent=43 // pred_region
          _
        $region68: #{lstm_net_forward.1} parent=43 // pred_fallthru
          _
      $region44: #{lstm_net_forward.1} parent=5 // pred_fallthru
        _
      %p1210 = scmp.le.s32.totalorder 2, %s14
      // Predicated region
      $region69: #{lstm_net_forward.1} parent=5 // pred_check
        %p1211 = pneg %p1210
      $region70: #{lstm_net_forward.1} parent=5 // pred_check_branch
        %1213 = sbr.rel (%p1211) target = $region72
      $region71: #{lstm_net_forward.1} parent=5 // pred_region
        %s1214 = ssub.s32 %s14, 2
      $region72: #{lstm_net_forward.1} parent=5 // pred_fallthru
        _
    $region6: #{lstm_net_forward.1} parent=1 // loop_footer
      %s18 = sadd.s32 1, %s14
    $region7: #{lstm_net_forward.1} parent=1 // loop_footer_branch
      %13 = sbr.rel target = $region3
    $region8: #{lstm_net_forward.1} parent=1 // loop_exit
      _
    %1215 = vsyncpa [#allocation5], 1
    %s1216 = scalar_lea.sflag [#allocation5], 1
    %1217 = vsyncpa %s1216, 1
    %1218 = vsyncpa [#allocation7], 1

</llo_original>
